<compile_context>
chip_gen: v7x
topology: tpu7x:2x2x1
jax: 0.10.0
libtpu: 0.0.40
codegen_flags: <defaults>
</compile_context>

<pallas_src>
import functools

import jax
import jax.numpy as jnp
from jax.experimental import pallas as pl
from jax.experimental.pallas import tpu as pltpu


def _round_up(x, m):
    return (x + m - 1) // m * m


# ---------------------------------------------------------------------------
# Fused kernel: all conv blocks + FC head + softmax in one pallas_call
# ---------------------------------------------------------------------------
def _fused_forward_kernel(*refs, B, layer_meta, fc_meta, compute_dtype):
    """Whole StyleCNNNet forward for the full batch, VMEM resident.

    Activation layout: 2-D (B*S, Cp) slabs, channels on the 128-lane axis,
    per-batch row stride S (multiple of 8).  Row b*S is the conv left-pad row
    (zero), rows b*S+1 .. b*S+L hold positions 0..L-1, remaining rows are zero.

    refs layout (all VMEM):
      inputs : x slab (B*S0, Cp0); per conv layer [w (K,Cinp,Coutp), bias,
               bn_scale, bn_shift, row_mask]; then w1, b1, w2, b2 (lane padded)
      outputs: probs (B, Cclsp)
      scratch: two ping-pong activation buffers (maxR, maxC) f32
    """
    n_conv = len(layer_meta)
    x_ref = refs[0]
    idx = 1
    conv_refs = []
    for _ in range(n_conv):
        conv_refs.append(refs[idx:idx + 5])
        idx += 5
    w1_ref, b1_ref, w2_ref, b2_ref = refs[idx:idx + 4]
    idx += 4
    o_ref = refs[idx]
    idx += 1
    buf_refs = refs[idx:idx + 2]

    Lf, Cfp, S_f = fc_meta

    src_ref = x_ref
    buf_sel = 0

    for meta, (w_ref, b_ref, g_ref, t_ref, m_ref) in zip(layer_meta, conv_refs):
        (K, pool, S, R, Cinp, Coutp, Lc, Lout, S_nxt, R_nxt) = meta

        # ---- Conv1d(padding=1): K rolled full-slab matmuls (MXU) ----------
        # Output row r = b*S + 1 + l needs  sum_k  x[r + k - 1] @ w[k];
        # the shift by (k-1) is a circular sublane roll of the whole slab.
        # Wrap-around rows only ever land in masked (invalid) output rows.
        x0 = src_ref[0:R, 0:Cinp].astype(compute_dtype)
        acc = None
        for k in range(K):
            shift = (1 - k) % R
            xs = x0 if shift == 0 else pltpu.roll(x0, shift, 0)
            part = jnp.dot(xs, w_ref[k], preferred_element_type=jnp.float32)
            acc = part if acc is None else acc + part

        # bias + ReLU + BatchNorm1d (inference, folded) then zero the padding
        # rows with a dense (R,1) row-validity mask (broadcast over lanes).
        y = jnp.maximum(acc + b_ref[...], 0.0)
        y = (y * g_ref[...] + t_ref[...]) * m_ref[...]

        dst_ref = buf_refs[buf_sel]
        dst_ref[0:R, 0:Coutp] = y                      # one dense, aligned store
        buf_sel ^= 1
        src_ref = dst_ref

        if pool:
            # ---- MaxPool1d(K, stride=K): strided pl.ds loads + dense store.
            pdst_ref = buf_refs[buf_sel]
            pdst_ref[0:R_nxt, 0:Coutp] = jnp.zeros((R_nxt, Coutp), jnp.float32)
            for b in range(B):
                base = b * S + 1
                pmax = dst_ref[pl.ds(base, Lout, stride=K), 0:Coutp]
                for q in range(1, K):
                    pmax = jnp.maximum(
                        pmax, dst_ref[pl.ds(base + q, Lout, stride=K), 0:Coutp])
                lo = b * S_nxt + 1
                pdst_ref[lo:lo + Lout, 0:Coutp] = pmax
            buf_sel ^= 1
            src_ref = pdst_ref

    # ---- Flatten + FC head.  PyTorch's channel-major flatten is absorbed
    #      into w1's (position-major, channel-padded) row blocking, so h is an
    #      accumulation of Lf strided-row matmuls — no flatten buffer at all.
    Dp = w1_ref.shape[1]
    h = jnp.zeros((B, Dp), jnp.float32)
    for l in range(Lf):
        rows = src_ref[pl.ds(1 + l, B, stride=S_f), 0:Cfp].astype(compute_dtype)
        h = h + jnp.dot(rows, w1_ref[l * Cfp:(l + 1) * Cfp, :],
                        preferred_element_type=jnp.float32)
    h = jnp.maximum(h + b1_ref[...], 0.0)
    logits = jnp.dot(h.astype(compute_dtype), w2_ref[...],
                     preferred_element_type=jnp.float32) + b2_ref[...]
    mx = jnp.max(logits, axis=-1, keepdims=True)
    e = jnp.exp(logits - mx)                  # padded classes: exp(-1e30) == 0
    denom = jnp.sum(e, axis=-1, keepdims=True)
    o_ref[...] = (e * pl.reciprocal(denom, approx=False)).astype(o_ref.dtype)


# ---------------------------------------------------------------------------
# Wrapper: single pallas_call, whole-array VMEM blocks, no grid
# ---------------------------------------------------------------------------
def style_cnn_forward(x_ncl, params, *, compute_dtype=jnp.float32):
    """x_ncl: (B, num_of_feature, max_len) float32 (PyTorch NCL layout).

    compute_dtype: dtype of the MXU matmul operands (weights / activations fed
    to jnp.dot).  jnp.bfloat16 is recommended on v5e/v6e/v7x; accumulation and
    all elementwise math stay f32 (default f32 so the self-test matches the
    f32 reference tightly).
    """
    B, C0, L0 = map(int, x_ncl.shape)

    # ---------------- layer geometry planning ------------------------------
    conv_infos = []
    L = L0
    for cp in params["convs"]:
        K = int(cp["ks"])
        pool = bool(cp["pool"])
        Cin, Cout = int(cp["w"].shape[1]), int(cp["w"].shape[2])
        Lc = L + 3 - K                              # Conv1d(padding=1) length
        Lout = (Lc - K) // K + 1 if pool else Lc    # MaxPool1d floor semantics
        conv_infos.append(dict(K=K, pool=pool, Cin=Cin, Cout=Cout,
                               L_in=L, Lc=Lc, L_out=Lout))
        L = Lout
    final_L = L
    last_idx = len(conv_infos) - 1

    # Segments = maximal conv runs separated by pooling.  All convs of one
    # segment share one per-batch row stride S (multiple of 8) so a conv's
    # input and output slabs use the same stride and the shift is a pure roll.
    segs, cur = [], []
    for i, info in enumerate(conv_infos):
        cur.append(i)
        if info["pool"]:
            segs.append(cur)
            cur = []
    if cur:
        segs.append(cur)
    seg_S = []
    for seg in segs:
        need = max(max(conv_infos[i]["L_in"], conv_infos[i]["Lc"]) for i in seg)
        seg_S.append(_round_up(need + 2, 8))
    if conv_infos[last_idx]["pool"]:                # trailing pooled activation
        seg_S.append(_round_up(final_L + 2, 8))
    seg_of = {}
    for si, seg in enumerate(segs):
        for i in seg:
            seg_of[i] = si

    # ---------------- input prep: (B, C, L) -> padded slab (B*S0, Cp0) ------
    Cp0 = _round_up(C0, 128)
    S0 = seg_S[0]
    x_blc = jnp.transpose(x_ncl, (0, 2, 1)).astype(jnp.float32)      # (B,L,C)
    x_blc = jnp.pad(x_blc, ((0, 0), (1, S0 - L0 - 1), (0, Cp0 - C0)))
    x2d = x_blc.reshape(B * S0, Cp0)

    inputs = [x2d]
    layer_meta = []
    buf_dims = []
    flops = 0
    for i, (cp, info) in enumerate(zip(params["convs"], conv_infos)):
        K, pool = info["K"], info["pool"]
        Cin, Cout = info["Cin"], info["Cout"]
        Cinp, Coutp = _round_up(Cin, 128), _round_up(Cout, 128)
        S = seg_S[seg_of[i]]
        R = B * S
        Lc, Lout = info["Lc"], info["L_out"]

        w = jnp.zeros((K, Cinp, Coutp), compute_dtype)
        w = w.at[:, :Cin, :Cout].set(cp["w"].astype(compute_dtype))
        bb = jnp.zeros((1, Coutp), jnp.float32).at[:, :Cout].set(
            cp["b"].reshape(1, Cout).astype(jnp.float32))
        sc = jnp.zeros((1, Coutp), jnp.float32).at[:, :Cout].set(
            cp["scale"].reshape(1, Cout).astype(jnp.float32))
        sh = jnp.zeros((1, Coutp), jnp.float32).at[:, :Cout].set(
            cp["shift"].reshape(1, Cout).astype(jnp.float32))
        # Row-validity mask for the conv output slab (1 on rows b*S+1..b*S+Lc).
        j = jnp.arange(R) % S
        mask = ((j >= 1) & (j <= Lc)).astype(jnp.float32).reshape(R, 1)
        inputs += [w, bb, sc, sh, mask]

        buf_dims.append((R, Coutp))
        if pool:
            S_nxt = seg_S[seg_of[i] + 1]
            R_nxt = B * S_nxt
            buf_dims.append((R_nxt, Coutp))
        else:
            S_nxt = R_nxt = 0
        layer_meta.append((K, pool, S, R, Cinp, Coutp, Lc, Lout, S_nxt, R_nxt))
        flops += 2 * R * Cinp * Coutp * K

    # Final activation geometry (input of the flatten/FC).
    Cf = conv_infos[last_idx]["Cout"]
    Cfp = _round_up(Cf, 128)
    Lf = final_L
    S_f = (seg_S[seg_of[last_idx] + 1] if conv_infos[last_idx]["pool"]
           else seg_S[seg_of[last_idx]])

    # ---------------- FC head prep (lane padded) ----------------------------
    D = int(params["w1"].shape[1])
    Ccls = int(params["w2"].shape[1])
    Dp, Cclsp = _round_up(D, 128), _round_up(Ccls, 128)
    F = int(params["w1"].shape[0])
    assert F == Cf * Lf, (F, Cf, Lf)
    # PyTorch flatten order is channel-major (row c*Lf + l); re-block it into
    # Lf position-major blocks of Cfp (padded) rows so the kernel never builds
    # a flattened activation.
    w1 = params["w1"].reshape(Cf, Lf, D).transpose(1, 0, 2)          # (Lf,Cf,D)
    w1 = jnp.pad(w1, ((0, 0), (0, Cfp - Cf), (0, Dp - D)))
    w1 = w1.reshape(Lf * Cfp, Dp).astype(compute_dtype)
    b1 = jnp.zeros((1, Dp), jnp.float32).at[:, :D].set(
        params["b1"].reshape(1, D).astype(jnp.float32))
    w2 = jnp.zeros((Dp, Cclsp), compute_dtype).at[:D, :Ccls].set(
        params["w2"].astype(compute_dtype))
    b2 = jnp.full((1, Cclsp), -1e30, jnp.float32).at[:, :Ccls].set(
        params["b2"].reshape(1, Ccls).astype(jnp.float32))
    inputs += [w1, b1, w2, b2]
    flops += 2 * B * (Lf * Cfp * Dp + Dp * Cclsp)

    # ---------------- scratch: two ping-pong activation buffers -------------
    # Peak VMEM = 2 * largest layer slab (not the sum over layers).
    maxR = max(r for r, _ in buf_dims)
    maxC = max(c for _, c in buf_dims)
    scratch = [pltpu.VMEM((maxR, maxC), jnp.float32),
               pltpu.VMEM((maxR, maxC), jnp.float32)]

    # ---------------- compiler params / cost estimate -----------------------
    in_bytes = sum(int(a.size) * a.dtype.itemsize for a in inputs)
    out_bytes = B * Cclsp * 4
    scratch_bytes = 2 * maxR * maxC * 4
    vmem_limit = int(min(64 << 20,
                         max(32 << 20,
                             2 * (in_bytes + out_bytes + scratch_bytes))))
    cost = pl.CostEstimate(flops=int(flops),
                           transcendentals=int(B * Cclsp),
                           bytes_accessed=int(in_bytes + out_bytes))

    kernel = functools.partial(
        _fused_forward_kernel, B=B, layer_meta=tuple(layer_meta),
        fc_meta=(Lf, Cfp, S_f), compute_dtype=compute_dtype)

    # Single invocation, no grid: all weights + activations fit comfortably in
    # VMEM, so nothing is tiled or re-fetched between layers.
    probs_padded = pl.pallas_call(
        kernel,
        out_shape=jax.ShapeDtypeStruct((B, Cclsp), jnp.float32),
        scratch_shapes=scratch,
        compiler_params=pltpu.CompilerParams(vmem_limit_bytes=vmem_limit),
        cost_estimate=cost,
    )(*inputs)
    return probs_padded[:, :Ccls]


# ---------------------------------------------------------------------------
# Parameter init (deterministic, synthetic) — PyTorch-equivalent layout
# ---------------------------------------------------------------------------
def init_params(key, n_classes, num_of_feature, max_len, kernel_sizes, dense_size):
    filters = [num_of_feature, 64, 64, 128, 128, 128]
    eps = 1e-5
    params = {"convs": []}
    L = max_len
    for i, ks in enumerate(kernel_sizes):
        cin, cout = filters[i], filters[i + 1]
        key, k1, k2, k3, k4, k5, k6 = jax.random.split(key, 7)
        w = jax.random.normal(k1, (ks, cin, cout), jnp.float32) / jnp.sqrt(float(cin * ks))
        b = 0.05 * jax.random.normal(k2, (cout,), jnp.float32)
        gamma = 1.0 + 0.1 * jax.random.normal(k3, (cout,), jnp.float32)
        beta = 0.1 * jax.random.normal(k4, (cout,), jnp.float32)
        rmean = 0.1 * jax.random.normal(k5, (cout,), jnp.float32)
        rvar = 1.0 + 0.1 * jax.random.uniform(k6, (cout,), jnp.float32)
        scale = gamma / jnp.sqrt(rvar + eps)
        shift = beta - rmean * scale
        pool = (i % 2 == 1)
        params["convs"].append(
            dict(w=w, b=b, scale=scale, shift=shift, pool=pool, ks=ks))
        L = L + 3 - ks                       # Conv1d(padding=1) output length
        if pool:
            L = (L - ks) // ks + 1           # MaxPool1d(ks, stride=ks)

    feat = filters[len(kernel_sizes)] * L    # flattened size (torch dummy probe)
    key, k1, k2, k3, k4 = jax.random.split(key, 5)
    # w1 stored in PyTorch's channel-major flatten row order (c*L + l).
    params["w1"] = jax.random.normal(k1, (feat, dense_size), jnp.float32) / jnp.sqrt(float(feat))
    params["b1"] = 0.05 * jax.random.normal(k2, (dense_size,), jnp.float32)
    params["w2"] = jax.random.normal(k3, (dense_size, n_classes), jnp.float32) / jnp.sqrt(float(dense_size))
    params["b2"] = 0.05 * jax.random.normal(k4, (n_classes,), jnp.float32)
    return params


def _reference_forward(x_ncl, params):
    """Pure-JAX reference with identical math (PyTorch semantics), for checking."""
    x = jnp.transpose(x_ncl, (0, 2, 1))
    for cp in params["convs"]:
        K = cp["w"].shape[0]
        xp = jnp.pad(x, ((0, 0), (1, 1), (0, 0)))
        L = xp.shape[1] - (K - 1)
        acc = sum(jnp.einsum("blc,co->blo", xp[:, k:k + L, :], cp["w"][k])
                  for k in range(K))
        y = jnp.maximum(acc + cp["b"], 0.0)
        y = y * cp["scale"] + cp["shift"]
        if cp["pool"]:
            ks = cp["ks"]
            Lout = (L - ks) // ks + 1
            y = jnp.stack([jnp.max(y[:, p * ks:p * ks + ks, :], axis=1)
                           for p in range(Lout)], axis=1)
        x = y
    x = jnp.transpose(x, (0, 2, 1)).reshape(x.shape[0], -1)   # channel-major flatten
    h = jnp.maximum(x @ params["w1"] + params["b1"], 0.0)
    logits = h @ params["w2"] + params["b2"]
    return jax.nn.softmax(logits, axis=1)


if __name__ == "__main__":
    # Small, module-consistent config: StyleCNNNet(n_classes=3, num_of_feature=4,
    # max_len=16, kernel_sizes=[3, 3], dropout=0.1, dense_size=32)
    n_classes, num_of_feature, max_len = 3, 4, 16
    kernel_sizes = [3, 3]
    dense_size = 32
    batch = 2

    key = jax.random.PRNGKey(0)
    pkey, xkey = jax.random.split(key)
    params = init_params(pkey, n_classes, num_of_feature, max_len,
                         kernel_sizes, dense_size)
    x = jax.random.normal(xkey, (batch, num_of_feature, max_len), jnp.float32)

    out = jax.block_until_ready(style_cnn_forward(x, params))

    assert out.shape == (batch, n_classes), out.shape
    assert jnp.allclose(jnp.sum(out, axis=1), 1.0, atol=1e-5)

    ref = jax.block_until_ready(_reference_forward(x, params))
    assert jnp.allclose(out, ref, rtol=1e-4, atol=1e-5), (out, ref)

    print("KERNEL_OK")
</pallas_src>

<mosaic_0001>
module attributes {stable_mosaic.version = 11 : i64} {
  func.func @_fused_forward_kernel(%arg0: memref<48x128xf32, #tpu.memory_space<vmem>>, %arg1: memref<3x128x128xf32, #tpu.memory_space<vmem>>, %arg2: memref<1x128xf32, #tpu.memory_space<vmem>>, %arg3: memref<1x128xf32, #tpu.memory_space<vmem>>, %arg4: memref<1x128xf32, #tpu.memory_space<vmem>>, %arg5: memref<48x1xf32, #tpu.memory_space<vmem>>, %arg6: memref<3x128x128xf32, #tpu.memory_space<vmem>>, %arg7: memref<1x128xf32, #tpu.memory_space<vmem>>, %arg8: memref<1x128xf32, #tpu.memory_space<vmem>>, %arg9: memref<1x128xf32, #tpu.memory_space<vmem>>, %arg10: memref<48x1xf32, #tpu.memory_space<vmem>>, %arg11: memref<640x128xf32, #tpu.memory_space<vmem>>, %arg12: memref<1x128xf32, #tpu.memory_space<vmem>>, %arg13: memref<128x128xf32, #tpu.memory_space<vmem>>, %arg14: memref<1x128xf32, #tpu.memory_space<vmem>>, %arg15: memref<2x128xf32, #tpu.memory_space<vmem>>, %arg16: memref<48x128xf32, #tpu.memory_space<vmem>>, %arg17: memref<48x128xf32, #tpu.memory_space<vmem>>) attributes {dimension_semantics = [], scalar_prefetch = 0 : i64, scratch_operands = 2 : i64, tpu.core_type = #tpu.core_type<tc>} {
    %c0 = arith.constant 0 : index
    %c0_0 = arith.constant 0 : index
    %0 = vector.load %arg0[%c0, %c0_0] : memref<48x128xf32, #tpu.memory_space<vmem>>, vector<48x128xf32>
    %c1_i32 = arith.constant 1 : i32
    %1 = tpu.dynamic_rotate %0 by %c1_i32 dim 0 : vector<48x128xf32>, i32 -> vector<48x128xf32>
    %c0_1 = arith.constant 0 : index
    %c0_2 = arith.constant 0 : index
    %c0_3 = arith.constant 0 : index
    %2 = vector.load %arg1[%c0_1, %c0_2, %c0_3] : memref<3x128x128xf32, #tpu.memory_space<vmem>>, vector<1x128x128xf32>
    %3 = vector.shape_cast %2 : vector<1x128x128xf32> to vector<128x128xf32>
    %cst = arith.constant dense<0.000000e+00> : vector<48x128xf32>
    %4 = tpu.matmul %1, %3, %cst {dimension_numbers = #tpu.dot_dimension_numbers<[1], [0], [0], [1], [0, 0, 1, 1], [], []>} : vector<48x128xf32>, vector<128x128xf32>, vector<48x128xf32> -> vector<48x128xf32>
    %c1 = arith.constant 1 : index
    %c0_4 = arith.constant 0 : index
    %c0_5 = arith.constant 0 : index
    %5 = vector.load %arg1[%c1, %c0_4, %c0_5] : memref<3x128x128xf32, #tpu.memory_space<vmem>>, vector<1x128x128xf32>
    %6 = vector.shape_cast %5 : vector<1x128x128xf32> to vector<128x128xf32>
    %cst_6 = arith.constant dense<0.000000e+00> : vector<48x128xf32>
    %7 = tpu.matmul %0, %6, %cst_6 {dimension_numbers = #tpu.dot_dimension_numbers<[1], [0], [0], [1], [0, 0, 1, 1], [], []>} : vector<48x128xf32>, vector<128x128xf32>, vector<48x128xf32> -> vector<48x128xf32>
    %8 = arith.addf %4, %7 : vector<48x128xf32>
    %c47_i32 = arith.constant 47 : i32
    %9 = tpu.dynamic_rotate %0 by %c47_i32 dim 0 : vector<48x128xf32>, i32 -> vector<48x128xf32>
    %c2 = arith.constant 2 : index
    %c0_7 = arith.constant 0 : index
    %c0_8 = arith.constant 0 : index
    %10 = vector.load %arg1[%c2, %c0_7, %c0_8] : memref<3x128x128xf32, #tpu.memory_space<vmem>>, vector<1x128x128xf32>
    %11 = vector.shape_cast %10 : vector<1x128x128xf32> to vector<128x128xf32>
    %cst_9 = arith.constant dense<0.000000e+00> : vector<48x128xf32>
    %12 = tpu.matmul %9, %11, %cst_9 {dimension_numbers = #tpu.dot_dimension_numbers<[1], [0], [0], [1], [0, 0, 1, 1], [], []>} : vector<48x128xf32>, vector<128x128xf32>, vector<48x128xf32> -> vector<48x128xf32>
    %13 = arith.addf %8, %12 : vector<48x128xf32>
    %c0_10 = arith.constant 0 : index
    %c0_11 = arith.constant 0 : index
    %14 = vector.load %arg2[%c0_10, %c0_11] : memref<1x128xf32, #tpu.memory_space<vmem>>, vector<1x128xf32>
    %15 = vector.broadcast %14 : vector<1x128xf32> to vector<48x128xf32>
    %16 = arith.addf %13, %15 : vector<48x128xf32>
    %cst_12 = arith.constant 0.000000e+00 : f32
    %17 = vector.broadcast %cst_12 : f32 to vector<48x128xf32>
    %18 = arith.maximumf %16, %17 : vector<48x128xf32>
    %c0_13 = arith.constant 0 : index
    %c0_14 = arith.constant 0 : index
    %19 = vector.load %arg3[%c0_13, %c0_14] : memref<1x128xf32, #tpu.memory_space<vmem>>, vector<1x128xf32>
    %20 = vector.broadcast %19 : vector<1x128xf32> to vector<48x128xf32>
    %21 = arith.mulf %18, %20 : vector<48x128xf32>
    %c0_15 = arith.constant 0 : index
    %c0_16 = arith.constant 0 : index
    %22 = vector.load %arg4[%c0_15, %c0_16] : memref<1x128xf32, #tpu.memory_space<vmem>>, vector<1x128xf32>
    %23 = vector.broadcast %22 : vector<1x128xf32> to vector<48x128xf32>
    %24 = arith.addf %21, %23 : vector<48x128xf32>
    %c0_17 = arith.constant 0 : index
    %c0_18 = arith.constant 0 : index
    %25 = vector.load %arg5[%c0_17, %c0_18] : memref<48x1xf32, #tpu.memory_space<vmem>>, vector<48x1xf32>
    %26 = vector.broadcast %25 : vector<48x1xf32> to vector<48x128xf32>
    %27 = arith.mulf %24, %26 : vector<48x128xf32>
    %c0_19 = arith.constant 0 : index
    %c0_20 = arith.constant 0 : index
    %28 = vector.load %arg16[%c0_19, %c0_20] : memref<48x128xf32, #tpu.memory_space<vmem>>, vector<48x128xf32>
    tpu.vector_store %arg16[%c0_19, %c0_20], %27 {strides = array<i32>} : memref<48x128xf32, #tpu.memory_space<vmem>>, vector<48x128xf32>,
    %c0_21 = arith.constant 0 : index
    %c0_22 = arith.constant 0 : index
    %29 = vector.load %arg16[%c0_21, %c0_22] : memref<48x128xf32, #tpu.memory_space<vmem>>, vector<48x128xf32>
    %c1_i32_23 = arith.constant 1 : i32
    %30 = tpu.dynamic_rotate %29 by %c1_i32_23 dim 0 : vector<48x128xf32>, i32 -> vector<48x128xf32>
    %c0_24 = arith.constant 0 : index
    %c0_25 = arith.constant 0 : index
    %c0_26 = arith.constant 0 : index
    %31 = vector.load %arg6[%c0_24, %c0_25, %c0_26] : memref<3x128x128xf32, #tpu.memory_space<vmem>>, vector<1x128x128xf32>
    %32 = vector.shape_cast %31 : vector<1x128x128xf32> to vector<128x128xf32>
    %cst_27 = arith.constant dense<0.000000e+00> : vector<48x128xf32>
    %33 = tpu.matmul %30, %32, %cst_27 {dimension_numbers = #tpu.dot_dimension_numbers<[1], [0], [0], [1], [0, 0, 1, 1], [], []>} : vector<48x128xf32>, vector<128x128xf32>, vector<48x128xf32> -> vector<48x128xf32>
    %c1_28 = arith.constant 1 : index
    %c0_29 = arith.constant 0 : index
    %c0_30 = arith.constant 0 : index
    %34 = vector.load %arg6[%c1_28, %c0_29, %c0_30] : memref<3x128x128xf32, #tpu.memory_space<vmem>>, vector<1x128x128xf32>
    %35 = vector.shape_cast %34 : vector<1x128x128xf32> to vector<128x128xf32>
    %cst_31 = arith.constant dense<0.000000e+00> : vector<48x128xf32>
    %36 = tpu.matmul %29, %35, %cst_31 {dimension_numbers = #tpu.dot_dimension_numbers<[1], [0], [0], [1], [0, 0, 1, 1], [], []>} : vector<48x128xf32>, vector<128x128xf32>, vector<48x128xf32> -> vector<48x128xf32>
    %37 = arith.addf %33, %36 : vector<48x128xf32>
    %c47_i32_32 = arith.constant 47 : i32
    %38 = tpu.dynamic_rotate %29 by %c47_i32_32 dim 0 : vector<48x128xf32>, i32 -> vector<48x128xf32>
    %c2_33 = arith.constant 2 : index
    %c0_34 = arith.constant 0 : index
    %c0_35 = arith.constant 0 : index
    %39 = vector.load %arg6[%c2_33, %c0_34, %c0_35] : memref<3x128x128xf32, #tpu.memory_space<vmem>>, vector<1x128x128xf32>
    %40 = vector.shape_cast %39 : vector<1x128x128xf32> to vector<128x128xf32>
    %cst_36 = arith.constant dense<0.000000e+00> : vector<48x128xf32>
    %41 = tpu.matmul %38, %40, %cst_36 {dimension_numbers = #tpu.dot_dimension_numbers<[1], [0], [0], [1], [0, 0, 1, 1], [], []>} : vector<48x128xf32>, vector<128x128xf32>, vector<48x128xf32> -> vector<48x128xf32>
    %42 = arith.addf %37, %41 : vector<48x128xf32>
    %c0_37 = arith.constant 0 : index
    %c0_38 = arith.constant 0 : index
    %43 = vector.load %arg7[%c0_37, %c0_38] : memref<1x128xf32, #tpu.memory_space<vmem>>, vector<1x128xf32>
    %44 = vector.broadcast %43 : vector<1x128xf32> to vector<48x128xf32>
    %45 = arith.addf %42, %44 : vector<48x128xf32>
    %cst_39 = arith.constant 0.000000e+00 : f32
    %46 = vector.broadcast %cst_39 : f32 to vector<48x128xf32>
    %47 = arith.maximumf %45, %46 : vector<48x128xf32>
    %c0_40 = arith.constant 0 : index
    %c0_41 = arith.constant 0 : index
    %48 = vector.load %arg8[%c0_40, %c0_41] : memref<1x128xf32, #tpu.memory_space<vmem>>, vector<1x128xf32>
    %49 = vector.broadcast %48 : vector<1x128xf32> to vector<48x128xf32>
    %50 = arith.mulf %47, %49 : vector<48x128xf32>
    %c0_42 = arith.constant 0 : index
    %c0_43 = arith.constant 0 : index
    %51 = vector.load %arg9[%c0_42, %c0_43] : memref<1x128xf32, #tpu.memory_space<vmem>>, vector<1x128xf32>
    %52 = vector.broadcast %51 : vector<1x128xf32> to vector<48x128xf32>
    %53 = arith.addf %50, %52 : vector<48x128xf32>
    %c0_44 = arith.constant 0 : index
    %c0_45 = arith.constant 0 : index
    %54 = vector.load %arg10[%c0_44, %c0_45] : memref<48x1xf32, #tpu.memory_space<vmem>>, vector<48x1xf32>
    %55 = vector.broadcast %54 : vector<48x1xf32> to vector<48x128xf32>
    %56 = arith.mulf %53, %55 : vector<48x128xf32>
    %c0_46 = arith.constant 0 : index
    %c0_47 = arith.constant 0 : index
    %57 = vector.load %arg17[%c0_46, %c0_47] : memref<48x128xf32, #tpu.memory_space<vmem>>, vector<48x128xf32>
    tpu.vector_store %arg17[%c0_46, %c0_47], %56 {strides = array<i32>} : memref<48x128xf32, #tpu.memory_space<vmem>>, vector<48x128xf32>,
    %cst_48 = arith.constant 0.000000e+00 : f32
    %58 = vector.broadcast %cst_48 : f32 to vector<16x128xf32>
    %c0_49 = arith.constant 0 : index
    %c0_50 = arith.constant 0 : index
    %59 = vector.load %arg16[%c0_49, %c0_50] : memref<48x128xf32, #tpu.memory_space<vmem>>, vector<16x128xf32>
    tpu.vector_store %arg16[%c0_49, %c0_50], %58 {strides = array<i32>} : memref<48x128xf32, #tpu.memory_space<vmem>>, vector<16x128xf32>,
    %c1_51 = arith.constant 1 : index
    %c0_52 = arith.constant 0 : index
    %60 = tpu.strided_load %arg17[%c1_51, %c0_52] {strides = array<i32: 3, 1>} : memref<48x128xf32, #tpu.memory_space<vmem>>, vector<5x128xf32>
    %c2_53 = arith.constant 2 : index
    %c0_54 = arith.constant 0 : index
    %61 = tpu.strided_load %arg17[%c2_53, %c0_54] {strides = array<i32: 3, 1>} : memref<48x128xf32, #tpu.memory_space<vmem>>, vector<5x128xf32>
    %62 = arith.maximumf %60, %61 : vector<5x128xf32>
    %c3 = arith.constant 3 : index
    %c0_55 = arith.constant 0 : index
    %63 = tpu.strided_load %arg17[%c3, %c0_55] {strides = array<i32: 3, 1>} : memref<48x128xf32, #tpu.memory_space<vmem>>, vector<5x128xf32>
    %64 = arith.maximumf %62, %63 : vector<5x128xf32>
    %c1_56 = arith.constant 1 : index
    %c0_57 = arith.constant 0 : index
    %65 = vector.load %arg16[%c1_56, %c0_57] : memref<48x128xf32, #tpu.memory_space<vmem>>, vector<5x128xf32>
    tpu.vector_store %arg16[%c1_56, %c0_57], %64 {strides = array<i32>} : memref<48x128xf32, #tpu.memory_space<vmem>>, vector<5x128xf32>,
    %c25 = arith.constant 25 : index
    %c0_58 = arith.constant 0 : index
    %66 = tpu.strided_load %arg17[%c25, %c0_58] {strides = array<i32: 3, 1>} : memref<48x128xf32, #tpu.memory_space<vmem>>, vector<5x128xf32>
    %c26 = arith.constant 26 : index
    %c0_59 = arith.constant 0 : index
    %67 = tpu.strided_load %arg17[%c26, %c0_59] {strides = array<i32: 3, 1>} : memref<48x128xf32, #tpu.memory_space<vmem>>, vector<5x128xf32>
    %68 = arith.maximumf %66, %67 : vector<5x128xf32>
    %c27 = arith.constant 27 : index
    %c0_60 = arith.constant 0 : index
    %69 = tpu.strided_load %arg17[%c27, %c0_60] {strides = array<i32: 3, 1>} : memref<48x128xf32, #tpu.memory_space<vmem>>, vector<5x128xf32>
    %70 = arith.maximumf %68, %69 : vector<5x128xf32>
    %c9 = arith.constant 9 : index
    %c0_61 = arith.constant 0 : index
    %71 = vector.load %arg16[%c9, %c0_61] : memref<48x128xf32, #tpu.memory_space<vmem>>, vector<5x128xf32>
    tpu.vector_store %arg16[%c9, %c0_61], %70 {strides = array<i32>} : memref<48x128xf32, #tpu.memory_space<vmem>>, vector<5x128xf32>,
    %cst_62 = arith.constant 0.000000e+00 : f32
    %72 = vector.broadcast %cst_62 : f32 to vector<2x128xf32>
    %c1_63 = arith.constant 1 : index
    %c0_64 = arith.constant 0 : index
    %73 = tpu.strided_load %arg16[%c1_63, %c0_64] {strides = array<i32: 8, 1>} : memref<48x128xf32, #tpu.memory_space<vmem>>, vector<2x128xf32>
    %c0_65 = arith.constant 0 : index
    %c0_66 = arith.constant 0 : index
    %74 = vector.load %arg11[%c0_65, %c0_66] : memref<640x128xf32, #tpu.memory_space<vmem>>, vector<128x128xf32>
    %cst_67 = arith.constant dense<0.000000e+00> : vector<2x128xf32>
    %75 = tpu.matmul %73, %74, %cst_67 {dimension_numbers = #tpu.dot_dimension_numbers<[1], [0], [0], [1], [0, 0, 1, 1], [], []>} : vector<2x128xf32>, vector<128x128xf32>, vector<2x128xf32> -> vector<2x128xf32>
    %76 = arith.addf %72, %75 : vector<2x128xf32>
    %c2_68 = arith.constant 2 : index
    %c0_69 = arith.constant 0 : index
    %77 = tpu.strided_load %arg16[%c2_68, %c0_69] {strides = array<i32: 8, 1>} : memref<48x128xf32, #tpu.memory_space<vmem>>, vector<2x128xf32>
    %c128 = arith.constant 128 : index
    %c0_70 = arith.constant 0 : index
    %78 = vector.load %arg11[%c128, %c0_70] : memref<640x128xf32, #tpu.memory_space<vmem>>, vector<128x128xf32>
    %cst_71 = arith.constant dense<0.000000e+00> : vector<2x128xf32>
    %79 = tpu.matmul %77, %78, %cst_71 {dimension_numbers = #tpu.dot_dimension_numbers<[1], [0], [0], [1], [0, 0, 1, 1], [], []>} : vector<2x128xf32>, vector<128x128xf32>, vector<2x128xf32> -> vector<2x128xf32>
    %80 = arith.addf %76, %79 : vector<2x128xf32>
    %c3_72 = arith.constant 3 : index
    %c0_73 = arith.constant 0 : index
    %81 = tpu.strided_load %arg16[%c3_72, %c0_73] {strides = array<i32: 8, 1>} : memref<48x128xf32, #tpu.memory_space<vmem>>, vector<2x128xf32>
    %c256 = arith.constant 256 : index
    %c0_74 = arith.constant 0 : index
    %82 = vector.load %arg11[%c256, %c0_74] : memref<640x128xf32, #tpu.memory_space<vmem>>, vector<128x128xf32>
    %cst_75 = arith.constant dense<0.000000e+00> : vector<2x128xf32>
    %83 = tpu.matmul %81, %82, %cst_75 {dimension_numbers = #tpu.dot_dimension_numbers<[1], [0], [0], [1], [0, 0, 1, 1], [], []>} : vector<2x128xf32>, vector<128x128xf32>, vector<2x128xf32> -> vector<2x128xf32>
    %84 = arith.addf %80, %83 : vector<2x128xf32>
    %c4 = arith.constant 4 : index
    %c0_76 = arith.constant 0 : index
    %85 = tpu.strided_load %arg16[%c4, %c0_76] {strides = array<i32: 8, 1>} : memref<48x128xf32, #tpu.memory_space<vmem>>, vector<2x128xf32>
    %c384 = arith.constant 384 : index
    %c0_77 = arith.constant 0 : index
    %86 = vector.load %arg11[%c384, %c0_77] : memref<640x128xf32, #tpu.memory_space<vmem>>, vector<128x128xf32>
    %cst_78 = arith.constant dense<0.000000e+00> : vector<2x128xf32>
    %87 = tpu.matmul %85, %86, %cst_78 {dimension_numbers = #tpu.dot_dimension_numbers<[1], [0], [0], [1], [0, 0, 1, 1], [], []>} : vector<2x128xf32>, vector<128x128xf32>, vector<2x128xf32> -> vector<2x128xf32>
    %88 = arith.addf %84, %87 : vector<2x128xf32>
    %c5 = arith.constant 5 : index
    %c0_79 = arith.constant 0 : index
    %89 = tpu.strided_load %arg16[%c5, %c0_79] {strides = array<i32: 8, 1>} : memref<48x128xf32, #tpu.memory_space<vmem>>, vector<2x128xf32>
    %c512 = arith.constant 512 : index
    %c0_80 = arith.constant 0 : index
    %90 = vector.load %arg11[%c512, %c0_80] : memref<640x128xf32, #tpu.memory_space<vmem>>, vector<128x128xf32>
    %cst_81 = arith.constant dense<0.000000e+00> : vector<2x128xf32>
    %91 = tpu.matmul %89, %90, %cst_81 {dimension_numbers = #tpu.dot_dimension_numbers<[1], [0], [0], [1], [0, 0, 1, 1], [], []>} : vector<2x128xf32>, vector<128x128xf32>, vector<2x128xf32> -> vector<2x128xf32>
    %92 = arith.addf %88, %91 : vector<2x128xf32>
    %c0_82 = arith.constant 0 : index
    %c0_83 = arith.constant 0 : index
    %93 = vector.load %arg12[%c0_82, %c0_83] : memref<1x128xf32, #tpu.memory_space<vmem>>, vector<1x128xf32>
    %94 = vector.broadcast %93 : vector<1x128xf32> to vector<2x128xf32>
    %95 = arith.addf %92, %94 : vector<2x128xf32>
    %cst_84 = arith.constant 0.000000e+00 : f32
    %96 = vector.broadcast %cst_84 : f32 to vector<2x128xf32>
    %97 = arith.maximumf %95, %96 : vector<2x128xf32>
    %c0_85 = arith.constant 0 : index
    %c0_86 = arith.constant 0 : index
    %98 = vector.load %arg13[%c0_85, %c0_86] : memref<128x128xf32, #tpu.memory_space<vmem>>, vector<128x128xf32>
    %cst_87 = arith.constant dense<0.000000e+00> : vector<2x128xf32>
    %99 = tpu.matmul %97, %98, %cst_87 {dimension_numbers = #tpu.dot_dimension_numbers<[1], [0], [0], [1], [0, 0, 1, 1], [], []>} : vector<2x128xf32>, vector<128x128xf32>, vector<2x128xf32> -> vector<2x128xf32>
    %c0_88 = arith.constant 0 : index
    %c0_89 = arith.constant 0 : index
    %100 = vector.load %arg14[%c0_88, %c0_89] : memref<1x128xf32, #tpu.memory_space<vmem>>, vector<1x128xf32>
    %101 = vector.broadcast %100 : vector<1x128xf32> to vector<2x128xf32>
    %102 = arith.addf %99, %101 : vector<2x128xf32>
    %cst_90 = arith.constant dense<0xFF800000> : vector<2xf32>
    %103 = vector.multi_reduction <maximumf>, %102, %cst_90 [1] : vector<2x128xf32> to vector<2xf32>
    %104 = vector.shape_cast %103 : vector<2xf32> to vector<2x1xf32>
    %105 = vector.broadcast %104 : vector<2x1xf32> to vector<2x128xf32>
    %106 = arith.subf %102, %105 : vector<2x128xf32>
    %107 = math.exp %106 : vector<2x128xf32>
    %cst_91 = arith.constant dense<0.000000e+00> : vector<2xf32>
    %108 = vector.multi_reduction <add>, %107, %cst_91 [1] : vector<2x128xf32> to vector<2xf32>
    %109 = vector.shape_cast %108 : vector<2xf32> to vector<2x1xf32>
    %110 = tpu.reciprocal %109 : vector<2x1xf32> -> vector<2x1xf32>
    %111 = vector.broadcast %110 : vector<2x1xf32> to vector<2x128xf32>
    %112 = arith.mulf %107, %111 : vector<2x128xf32>
    %c0_92 = arith.constant 0 : index
    %c0_93 = arith.constant 0 : index
    %113 = vector.load %arg15[%c0_92, %c0_93] : memref<2x128xf32, #tpu.memory_space<vmem>>, vector<2x128xf32>
    tpu.vector_store %arg15[%c0_92, %c0_93], %112 {strides = array<i32>} : memref<2x128xf32, #tpu.memory_space<vmem>>, vector<2x128xf32>,
    return
  }
}

</mosaic_0001>

<llo_original>
// kernel: tpu_custom_call.1
$region0: #{tpu_custom_call.1}
  #allocation0 [shape = 'u32[]', space=smem, size = 0x4, offset = 0x4, fixed_abs, tag = 'smem constant byte address 0x4 - core index']
  #allocation1 [shape = 'u32[144,128]{1,0:T(1,128)}', space=vmem, size = 0x12000, scoped, tag = 'internal scratch']
  #allocation2 [shape = 'f32[48,128]{1,0:T(8,128)}', space=vmem, size = 0x6000, scoped, tag = 'scratch operand']
  #allocation3 [shape = 'f32[48,128]{1,0:T(8,128)}', space=vmem, size = 0x6000, scoped, tag = 'scratch operand']
  %s0 = inlined_call_operand.hbm [shape: f32[48,128], index: 0, kind: input, shape index: {}]
  %s1 = inlined_call_operand.hbm [shape: f32[3,128,128], index: 1, kind: input, shape index: {}]
  %s2 = inlined_call_operand.vmem [shape: f32[1,128], index: 2, kind: input, shape index: {}]
  %s3 = inlined_call_operand.vmem [shape: f32[1,128], index: 3, kind: input, shape index: {}]
  %s4 = inlined_call_operand.vmem [shape: f32[1,128], index: 4, kind: input, shape index: {}]
  %s5 = inlined_call_operand.vmem [shape: f32[48,1], index: 5, kind: input, shape index: {}]
  %s6 = inlined_call_operand.hbm [shape: f32[3,128,128], index: 6, kind: input, shape index: {}]
  %s7 = inlined_call_operand.vmem [shape: f32[1,128], index: 7, kind: input, shape index: {}]
  %s8 = inlined_call_operand.vmem [shape: f32[1,128], index: 8, kind: input, shape index: {}]
  %s9 = inlined_call_operand.vmem [shape: f32[1,128], index: 9, kind: input, shape index: {}]
  %s10 = inlined_call_operand.vmem [shape: f32[48,1], index: 10, kind: input, shape index: {}]
  %s11 = inlined_call_operand.hbm [shape: f32[640,128], index: 11, kind: input, shape index: {}]
  %s12 = inlined_call_operand.vmem [shape: f32[1,128], index: 12, kind: input, shape index: {}]
  %s13 = inlined_call_operand.vmem [shape: f32[128,128], index: 13, kind: input, shape index: {}]
  %s14 = inlined_call_operand.vmem [shape: f32[1,128], index: 14, kind: input, shape index: {}]
  %s15 = inlined_call_operand.hbm [shape: f32[2,128], index: 15, kind: output, shape index: {}]
  %s16 = sld [smem:[#allocation0]]
  $region86: #{tpu_custom_call.1} parent=0
    _
  %s18 = ssub.s32 1, %s16
  %s19 = scalar_select 0, %s18, %s16
  $region1: #{tpu_custom_call.1} parent=0
    #allocation4 [shape = 'u8[24576]{0}', space=vmem, size = 0x6000, scoped, tag = 'input window, operand 0, single buffered']
    #allocation5 [shape = 's32[1]{0}', space=sflag, size = 0x4, scoped, tag = 'scoped memory for tpu_custom_call.1']
    #allocation6 [shape = 's32[1]{0}', space=sflag, size = 0x4, scoped, tag = 'scoped memory for tpu_custom_call.1']
    #allocation7 [shape = 'u8[196608]{0}', space=vmem, size = 0x30000, scoped, tag = 'input window, operand 1, single buffered']
    #allocation8 [shape = 's32[1]{0}', space=sflag, size = 0x4, scoped, tag = 'scoped memory for tpu_custom_call.1']
    #allocation9 [shape = 'u8[196608]{0}', space=vmem, size = 0x30000, scoped, tag = 'input window, operand 6, single buffered']
    #allocation10 [shape = 'u8[327680]{0}', space=vmem, size = 0x50000, scoped, tag = 'input window, operand 11, single buffered']
    #allocation11 [shape = 's32[1]{0}', space=sflag, size = 0x4, scoped, tag = 'scoped memory for tpu_custom_call.1']
    #allocation12 [shape = 'u8[1024]{0}', space=vmem, size = 0x400, scoped, tag = 'output window, operand 0, single buffered']
    %20 = vsyncpa [#allocation5], 0
    %21 = vsyncpa [#allocation8], 0
    %22 = vsyncpa [#allocation11], 0
    %23 = vsyncpa [#allocation6], 0
    // Predicated region
    $region2: #{tpu_custom_call.1} parent=1 // pred_check
      _
    $region3: #{tpu_custom_call.1} parent=1 // pred_check_branch
      %25 = sbr.rel (0) target = $region5
    $region4: #{tpu_custom_call.1} parent=1 // pred_region
      %s27 = ssub.s32 768, 768
      %28 = vsyncadd [#allocation5], %s27
      %s29 = sshll.u32 [#allocation4], 4
      %s30 = int_to_ptr.vmem [resolvable:$true] %s29
      %35 = dma.hbm_to_vmem [thread:$0]  %s0, 768, %s30, [#allocation5], 128, 128, 8
    $region5: #{tpu_custom_call.1} parent=1 // pred_fallthru
      _
    // Predicated region
    $region6: #{tpu_custom_call.1} parent=1 // pred_check
      _
    $region7: #{tpu_custom_call.1} parent=1 // pred_check_branch
      %37 = sbr.rel (0) target = $region9
    $region8: #{tpu_custom_call.1} parent=1 // pred_region
      %s39 = ssub.s32 6144, 6144
      %40 = vsyncadd [#allocation8], %s39
      %s41 = sshll.u32 [#allocation7], 4
      %s42 = int_to_ptr.vmem [resolvable:$true] %s41
      %47 = dma.hbm_to_vmem [thread:$0]  %s1, 6144, %s42, [#allocation8], 128, 128, 8
    $region9: #{tpu_custom_call.1} parent=1 // pred_fallthru
      _
    // Predicated region
    $region10: #{tpu_custom_call.1} parent=1 // pred_check
      _
    $region11: #{tpu_custom_call.1} parent=1 // pred_check_branch
      %49 = sbr.rel (0) target = $region13
    $region12: #{tpu_custom_call.1} parent=1 // pred_region
      _
    $region13: #{tpu_custom_call.1} parent=1 // pred_fallthru
      _
    // Predicated region
    $region14: #{tpu_custom_call.1} parent=1 // pred_check
      _
    $region15: #{tpu_custom_call.1} parent=1 // pred_check_branch
      %51 = sbr.rel (0) target = $region17
    $region16: #{tpu_custom_call.1} parent=1 // pred_region
      _
    $region17: #{tpu_custom_call.1} parent=1 // pred_fallthru
      _
    // Predicated region
    $region18: #{tpu_custom_call.1} parent=1 // pred_check
      _
    $region19: #{tpu_custom_call.1} parent=1 // pred_check_branch
      %53 = sbr.rel (0) target = $region21
    $region20: #{tpu_custom_call.1} parent=1 // pred_region
      _
    $region21: #{tpu_custom_call.1} parent=1 // pred_fallthru
      _
    // Predicated region
    $region22: #{tpu_custom_call.1} parent=1 // pred_check
      _
    $region23: #{tpu_custom_call.1} parent=1 // pred_check_branch
      %55 = sbr.rel (0) target = $region25
    $region24: #{tpu_custom_call.1} parent=1 // pred_region
      _
    $region25: #{tpu_custom_call.1} parent=1 // pred_fallthru
      _
    // Predicated region
    $region26: #{tpu_custom_call.1} parent=1 // pred_check
      _
    $region27: #{tpu_custom_call.1} parent=1 // pred_check_branch
      %57 = sbr.rel (0) target = $region29
    $region28: #{tpu_custom_call.1} parent=1 // pred_region
      %s59 = ssub.s32 6144, 6144
      %60 = vsyncadd [#allocation8], %s59
      %s61 = sshll.u32 [#allocation9], 4
      %s62 = int_to_ptr.vmem [resolvable:$true] %s61
      %67 = dma.hbm_to_vmem [thread:$0]  %s6, 6144, %s62, [#allocation8], 128, 128, 8
    $region29: #{tpu_custom_call.1} parent=1 // pred_fallthru
      _
    // Predicated region
    $region30: #{tpu_custom_call.1} parent=1 // pred_check
      _
    $region31: #{tpu_custom_call.1} parent=1 // pred_check_branch
      %69 = sbr.rel (0) target = $region33
    $region32: #{tpu_custom_call.1} parent=1 // pred_region
      _
    $region33: #{tpu_custom_call.1} parent=1 // pred_fallthru
      _
    // Predicated region
    $region34: #{tpu_custom_call.1} parent=1 // pred_check
      _
    $region35: #{tpu_custom_call.1} parent=1 // pred_check_branch
      %71 = sbr.rel (0) target = $region37
    $region36: #{tpu_custom_call.1} parent=1 // pred_region
      _
    $region37: #{tpu_custom_call.1} parent=1 // pred_fallthru
      _
    // Predicated region
    $region38: #{tpu_custom_call.1} parent=1 // pred_check
      _
    $region39: #{tpu_custom_call.1} parent=1 // pred_check_branch
      %73 = sbr.rel (0) target = $region41
    $region40: #{tpu_custom_call.1} parent=1 // pred_region
      _
    $region41: #{tpu_custom_call.1} parent=1 // pred_fallthru
      _
    // Predicated region
    $region42: #{tpu_custom_call.1} parent=1 // pred_check
      _
    $region43: #{tpu_custom_call.1} parent=1 // pred_check_branch
      %75 = sbr.rel (0) target = $region45
    $region44: #{tpu_custom_call.1} parent=1 // pred_region
      _
    $region45: #{tpu_custom_call.1} parent=1 // pred_fallthru
      _
    // Predicated region
    $region46: #{tpu_custom_call.1} parent=1 // pred_check
      _
    $region47: #{tpu_custom_call.1} parent=1 // pred_check_branch
      %77 = sbr.rel (0) target = $region49
    $region48: #{tpu_custom_call.1} parent=1 // pred_region
      %s79 = ssub.s32 10240, 10240
      %80 = vsyncadd [#allocation11], %s79
      %s81 = sshll.u32 [#allocation10], 4
      %s82 = int_to_ptr.vmem [resolvable:$true] %s81
      %87 = dma.hbm_to_vmem [thread:$0]  %s11, 10240, %s82, [#allocation11], 128, 128, 8
    $region49: #{tpu_custom_call.1} parent=1 // pred_fallthru
      _
    // Predicated region
    $region50: #{tpu_custom_call.1} parent=1 // pred_check
      _
    $region51: #{tpu_custom_call.1} parent=1 // pred_check_branch
      %89 = sbr.rel (0) target = $region53
    $region52: #{tpu_custom_call.1} parent=1 // pred_region
      _
    $region53: #{tpu_custom_call.1} parent=1 // pred_fallthru
      _
    // Predicated region
    $region54: #{tpu_custom_call.1} parent=1 // pred_check
      _
    $region55: #{tpu_custom_call.1} parent=1 // pred_check_branch
      %91 = sbr.rel (0) target = $region57
    $region56: #{tpu_custom_call.1} parent=1 // pred_region
      _
    $region57: #{tpu_custom_call.1} parent=1 // pred_fallthru
      _
    // Predicated region
    $region58: #{tpu_custom_call.1} parent=1 // pred_check
      _
    $region59: #{tpu_custom_call.1} parent=1 // pred_check_branch
      %93 = sbr.rel (0) target = $region61
    $region60: #{tpu_custom_call.1} parent=1 // pred_region
      _
    $region61: #{tpu_custom_call.1} parent=1 // pred_fallthru
      _
    // Predicated region
    $region62: #{tpu_custom_call.1} parent=1 // pred_check
      _
    $region63: #{tpu_custom_call.1} parent=1 // pred_check_branch
      %95 = sbr.rel (0) target = $region65
    $region64: #{tpu_custom_call.1} parent=1 // pred_region
      %96 = dma.done [#allocation5], 768
    $region65: #{tpu_custom_call.1} parent=1 // pred_fallthru
      _
    // Predicated region
    $region66: #{tpu_custom_call.1} parent=1 // pred_check
      _
    $region67: #{tpu_custom_call.1} parent=1 // pred_check_branch
      %98 = sbr.rel (0) target = $region69
    $region68: #{tpu_custom_call.1} parent=1 // pred_region
      %99 = dma.done [#allocation8], 6144
    $region69: #{tpu_custom_call.1} parent=1 // pred_fallthru
      _
    // Predicated region
    $region70: #{tpu_custom_call.1} parent=1 // pred_check
      _
    $region71: #{tpu_custom_call.1} parent=1 // pred_check_branch
      %101 = sbr.rel (0) target = $region73
    $region72: #{tpu_custom_call.1} parent=1 // pred_region
      %102 = dma.done [#allocation8], 6144
    $region73: #{tpu_custom_call.1} parent=1 // pred_fallthru
      _
    // Predicated region
    $region74: #{tpu_custom_call.1} parent=1 // pred_check
      _
    $region75: #{tpu_custom_call.1} parent=1 // pred_check_branch
      %104 = sbr.rel (0) target = $region77
    $region76: #{tpu_custom_call.1} parent=1 // pred_region
      %105 = dma.done [#allocation11], 10240
    $region77: #{tpu_custom_call.1} parent=1 // pred_fallthru
      _
    %v106 = vld [vmem:[#allocation4] sm:$0xff]
    %v107 = vld [vmem:[#allocation4 + $0x8] sm:$0xff]
    %v108 = vld [vmem:[#allocation4 + $0x10] sm:$0xff]
    %v109 = vld [vmem:[#allocation4 + $0x18] sm:$0xff]
    %v110 = vld [vmem:[#allocation4 + $0x20] sm:$0xff]
    %v111 = vld [vmem:[#allocation4 + $0x28] sm:$0xff]
    %v112 = vrot.slane %v106, 7
    %v113 = vrot.slane %v107, 7
    %v114 = vrot.slane %v108, 7
    %v115 = vrot.slane %v109, 7
    %v116 = vrot.slane %v110, 7
    %v117 = vrot.slane %v111, 7
    %v118 = vlaneseq
    %v119 = vshrl.u32 %v118, 7
    %vm120 = vcmp.lt.s32.totalorder %v119, 1
    %v121 = vsel %vm120, %v116, %v117
    %v122 = vsel %vm120, %v115, %v116
    %v123 = vsel %vm120, %v114, %v115
    %v124 = vsel %vm120, %v113, %v114
    %v125 = vsel %vm120, %v112, %v113
    %v126 = vsel %vm120, %v117, %v112
    %v127 = vld [vmem:[#allocation7] sm:$0xff]
    %v128 = vld [vmem:[#allocation7 + $0x8] sm:$0xff]
    %v129 = vld [vmem:[#allocation7 + $0x10] sm:$0xff]
    %v130 = vld [vmem:[#allocation7 + $0x18] sm:$0xff]
    %v131 = vld [vmem:[#allocation7 + $0x20] sm:$0xff]
    %v132 = vld [vmem:[#allocation7 + $0x28] sm:$0xff]
    %v133 = vld [vmem:[#allocation7 + $0x30] sm:$0xff]
    %v134 = vld [vmem:[#allocation7 + $0x38] sm:$0xff]
    %v135 = vld [vmem:[#allocation7 + $0x40] sm:$0xff]
    %v136 = vld [vmem:[#allocation7 + $0x48] sm:$0xff]
    %v137 = vld [vmem:[#allocation7 + $0x50] sm:$0xff]
    %v138 = vld [vmem:[#allocation7 + $0x58] sm:$0xff]
    %v139 = vld [vmem:[#allocation7 + $0x60] sm:$0xff]
    %v140 = vld [vmem:[#allocation7 + $0x68] sm:$0xff]
    %v141 = vld [vmem:[#allocation7 + $0x70] sm:$0xff]
    %v142 = vld [vmem:[#allocation7 + $0x78] sm:$0xff]
    %s143 = scalar_lea.vmem [#allocation7], 128
    %v144 = vld [vmem:[%s143] sm:$0xff]
    %v145 = vld [vmem:[%s143 + $0x8] sm:$0xff]
    %v146 = vld [vmem:[%s143 + $0x10] sm:$0xff]
    %v147 = vld [vmem:[%s143 + $0x18] sm:$0xff]
    %v148 = vld [vmem:[%s143 + $0x20] sm:$0xff]
    %v149 = vld [vmem:[%s143 + $0x28] sm:$0xff]
    %v150 = vld [vmem:[%s143 + $0x30] sm:$0xff]
    %v151 = vld [vmem:[%s143 + $0x38] sm:$0xff]
    %v152 = vld [vmem:[%s143 + $0x40] sm:$0xff]
    %v153 = vld [vmem:[%s143 + $0x48] sm:$0xff]
    %v154 = vld [vmem:[%s143 + $0x50] sm:$0xff]
    %v155 = vld [vmem:[%s143 + $0x58] sm:$0xff]
    %v156 = vld [vmem:[%s143 + $0x60] sm:$0xff]
    %v157 = vld [vmem:[%s143 + $0x68] sm:$0xff]
    %v158 = vld [vmem:[%s143 + $0x70] sm:$0xff]
    %v159 = vld [vmem:[%s143 + $0x78] sm:$0xff]
    %160 = vmatprep.subr.mxu0 0.0
    %161 = vmatpush1.msra.mxu0 %v144
    %162 = vmatprep.subr.mxu0 0.0
    %163 = vmatpush1.msra.mxu0 %v145
    %164 = vmatprep.subr.mxu0 0.0
    %165 = vmatpush1.msra.mxu0 %v146
    %166 = vmatprep.subr.mxu0 0.0
    %167 = vmatpush1.msra.mxu0 %v147
    %168 = vmatprep.subr.mxu0 0.0
    %169 = vmatpush1.msra.mxu0 %v148
    %170 = vmatprep.subr.mxu0 0.0
    %171 = vmatpush1.msra.mxu0 %v149
    %172 = vmatprep.subr.mxu0 0.0
    %173 = vmatpush1.msra.mxu0 %v150
    %174 = vmatprep.subr.mxu0 0.0
    %175 = vmatpush1.msra.mxu0 %v151
    %176 = vmatprep.subr.mxu0 0.0
    %177 = vmatpush1.msra.mxu0 %v152
    %178 = vmatprep.subr.mxu0 0.0
    %179 = vmatpush1.msra.mxu0 %v153
    %180 = vmatprep.subr.mxu0 0.0
    %181 = vmatpush1.msra.mxu0 %v154
    %182 = vmatprep.subr.mxu0 0.0
    %183 = vmatpush1.msra.mxu0 %v155
    %184 = vmatprep.subr.mxu0 0.0
    %185 = vmatpush1.msra.mxu0 %v156
    %186 = vmatprep.subr.mxu0 0.0
    %187 = vmatpush1.msra.mxu0 %v157
    %188 = vmatprep.subr.mxu0 0.0
    %189 = vmatpush1.msra.mxu0 %v158
    %190 = vmatprep.subr.mxu0 0.0
    %191 = vmatpush1.msra.mxu0 %v159
    %192 = vmatprep.subr.mxu0 0.0
    %193 = vmatpush1.msra.mxu0 0.0
    %194 = vmatprep.subr.mxu0 0.0
    %195 = vmatpush1.msra.mxu0 0.0
    %196 = vmatprep.subr.mxu0 0.0
    %197 = vmatpush1.msra.mxu0 0.0
    %198 = vmatprep.subr.mxu0 0.0
    %199 = vmatpush1.msra.mxu0 0.0
    %200 = vmatprep.subr.mxu0 0.0
    %201 = vmatpush1.msra.mxu0 0.0
    %202 = vmatprep.subr.mxu0 0.0
    %203 = vmatpush1.msra.mxu0 0.0
    %204 = vmatprep.subr.mxu0 0.0
    %205 = vmatpush1.msra.mxu0 0.0
    %206 = vmatprep.subr.mxu0 0.0
    %207 = vmatpush1.msra.mxu0 0.0
    %208 = vmatprep.subr.mxu0 0.0
    %209 = vmatpush1.msra.mxu0 0.0
    %210 = vmatprep.subr.mxu0 0.0
    %211 = vmatpush1.msra.mxu0 0.0
    %212 = vmatprep.subr.mxu0 0.0
    %213 = vmatpush1.msra.mxu0 0.0
    %214 = vmatprep.subr.mxu0 0.0
    %215 = vmatpush1.msra.mxu0 0.0
    %216 = vmatprep.subr.mxu0 0.0
    %217 = vmatpush1.msra.mxu0 0.0
    %218 = vmatprep.subr.mxu0 0.0
    %219 = vmatpush1.msra.mxu0 0.0
    %220 = vmatprep.subr.mxu0 0.0
    %221 = vmatpush1.msra.mxu0 0.0
    %222 = vmatprep.subr.mxu0 0.0
    %223 = vmatpush1.msra.mxu0 0.0
    %224 = vmatprep.mubr.f32.mxu0 0.0
    %225 = vmatmul.mubr.f32.gmra.mrb[0].mxu0 %v106
    %v226 = vpop.f32.mrb[0].mxu0
    %v227 = vadd.f32 0.0, %v226
    %v228 = vpop.f32.mrb[0].mxu0
    %229 = vmatprep.mubr.f32.mxu0 0.0
    %230 = vmatmul.mubr.f32.gmra.mrb[0].mxu0 %v107
    %v231 = vpop.f32.mrb[0].mxu0
    %v232 = vadd.f32 0.0, %v231
    %v233 = vpop.f32.mrb[0].mxu0
    %234 = vmatprep.mubr.f32.mxu0 0.0
    %235 = vmatmul.mubr.f32.gmra.mrb[0].mxu0 %v108
    %v236 = vpop.f32.mrb[0].mxu0
    %v237 = vadd.f32 0.0, %v236
    %v238 = vpop.f32.mrb[0].mxu0
    %239 = vmatprep.mubr.f32.mxu0 0.0
    %240 = vmatmul.mubr.f32.gmra.mrb[0].mxu0 %v109
    %v241 = vpop.f32.mrb[0].mxu0
    %v242 = vadd.f32 0.0, %v241
    %v243 = vpop.f32.mrb[0].mxu0
    %244 = vmatprep.mubr.f32.mxu0 0.0
    %245 = vmatmul.mubr.f32.gmra.mrb[0].mxu0 %v110
    %v246 = vpop.f32.mrb[0].mxu0
    %v247 = vadd.f32 0.0, %v246
    %v248 = vpop.f32.mrb[0].mxu0
    %249 = vmatprep.mubr.f32.mxu0 0.0
    %250 = vmatmul.mubr.f32.gmra.mrb[0].mxu0 %v111
    %v251 = vpop.f32.mrb[0].mxu0
    %v252 = vadd.f32 0.0, %v251
    %v253 = vpop.f32.mrb[0].mxu0
    %254 = vdwg.mxu0
    %255 = vmatprep.subr.mxu0 0.0
    %256 = vmatpush1.msra.mxu0 %v127
    %257 = vmatprep.subr.mxu0 0.0
    %258 = vmatpush1.msra.mxu0 %v128
    %259 = vmatprep.subr.mxu0 0.0
    %260 = vmatpush1.msra.mxu0 %v129
    %261 = vmatprep.subr.mxu0 0.0
    %262 = vmatpush1.msra.mxu0 %v130
    %263 = vmatprep.subr.mxu0 0.0
    %264 = vmatpush1.msra.mxu0 %v131
    %265 = vmatprep.subr.mxu0 0.0
    %266 = vmatpush1.msra.mxu0 %v132
    %267 = vmatprep.subr.mxu0 0.0
    %268 = vmatpush1.msra.mxu0 %v133
    %269 = vmatprep.subr.mxu0 0.0
    %270 = vmatpush1.msra.mxu0 %v134
    %271 = vmatprep.subr.mxu0 0.0
    %272 = vmatpush1.msra.mxu0 %v135
    %273 = vmatprep.subr.mxu0 0.0
    %274 = vmatpush1.msra.mxu0 %v136
    %275 = vmatprep.subr.mxu0 0.0
    %276 = vmatpush1.msra.mxu0 %v137
    %277 = vmatprep.subr.mxu0 0.0
    %278 = vmatpush1.msra.mxu0 %v138
    %279 = vmatprep.subr.mxu0 0.0
    %280 = vmatpush1.msra.mxu0 %v139
    %281 = vmatprep.subr.mxu0 0.0
    %282 = vmatpush1.msra.mxu0 %v140
    %283 = vmatprep.subr.mxu0 0.0
    %284 = vmatpush1.msra.mxu0 %v141
    %285 = vmatprep.subr.mxu0 0.0
    %286 = vmatpush1.msra.mxu0 %v142
    %287 = vmatprep.subr.mxu0 0.0
    %288 = vmatpush1.msra.mxu0 0.0
    %289 = vmatprep.subr.mxu0 0.0
    %290 = vmatpush1.msra.mxu0 0.0
    %291 = vmatprep.subr.mxu0 0.0
    %292 = vmatpush1.msra.mxu0 0.0
    %293 = vmatprep.subr.mxu0 0.0
    %294 = vmatpush1.msra.mxu0 0.0
    %295 = vmatprep.subr.mxu0 0.0
    %296 = vmatpush1.msra.mxu0 0.0
    %297 = vmatprep.subr.mxu0 0.0
    %298 = vmatpush1.msra.mxu0 0.0
    %299 = vmatprep.subr.mxu0 0.0
    %300 = vmatpush1.msra.mxu0 0.0
    %301 = vmatprep.subr.mxu0 0.0
    %302 = vmatpush1.msra.mxu0 0.0
    %303 = vmatprep.subr.mxu0 0.0
    %304 = vmatpush1.msra.mxu0 0.0
    %305 = vmatprep.subr.mxu0 0.0
    %306 = vmatpush1.msra.mxu0 0.0
    %307 = vmatprep.subr.mxu0 0.0
    %308 = vmatpush1.msra.mxu0 0.0
    %309 = vmatprep.subr.mxu0 0.0
    %310 = vmatpush1.msra.mxu0 0.0
    %311 = vmatprep.subr.mxu0 0.0
    %312 = vmatpush1.msra.mxu0 0.0
    %313 = vmatprep.subr.mxu0 0.0
    %314 = vmatpush1.msra.mxu0 0.0
    %315 = vmatprep.subr.mxu0 0.0
    %316 = vmatpush1.msra.mxu0 0.0
    %317 = vmatprep.subr.mxu0 0.0
    %318 = vmatpush1.msra.mxu0 0.0
    %319 = vmatprep.mubr.f32.mxu0 0.0
    %320 = vmatmul.mubr.f32.gmra.mrb[0].mxu0 %v126
    %v321 = vpop.f32.mrb[0].mxu0
    %v322 = vadd.f32 %v227, %v321
    %v323 = vpop.f32.mrb[0].mxu0
    %324 = vmatprep.mubr.f32.mxu0 0.0
    %325 = vmatmul.mubr.f32.gmra.mrb[0].mxu0 %v125
    %v326 = vpop.f32.mrb[0].mxu0
    %v327 = vadd.f32 %v232, %v326
    %v328 = vpop.f32.mrb[0].mxu0
    %329 = vmatprep.mubr.f32.mxu0 0.0
    %330 = vmatmul.mubr.f32.gmra.mrb[0].mxu0 %v124
    %v331 = vpop.f32.mrb[0].mxu0
    %v332 = vadd.f32 %v237, %v331
    %v333 = vpop.f32.mrb[0].mxu0
    %334 = vmatprep.mubr.f32.mxu0 0.0
    %335 = vmatmul.mubr.f32.gmra.mrb[0].mxu0 %v123
    %v336 = vpop.f32.mrb[0].mxu0
    %v337 = vadd.f32 %v242, %v336
    %v338 = vpop.f32.mrb[0].mxu0
    %339 = vmatprep.mubr.f32.mxu0 0.0
    %340 = vmatmul.mubr.f32.gmra.mrb[0].mxu0 %v122
    %v341 = vpop.f32.mrb[0].mxu0
    %v342 = vadd.f32 %v247, %v341
    %v343 = vpop.f32.mrb[0].mxu0
    %344 = vmatprep.mubr.f32.mxu0 0.0
    %345 = vmatmul.mubr.f32.gmra.mrb[0].mxu0 %v121
    %v346 = vpop.f32.mrb[0].mxu0
    %v347 = vadd.f32 %v252, %v346
    %v348 = vpop.f32.mrb[0].mxu0
    %349 = vdwg.mxu0
    %v350 = vrot.slane %v106, 1
    %v351 = vrot.slane %v107, 1
    %v352 = vrot.slane %v108, 1
    %v353 = vrot.slane %v109, 1
    %v354 = vrot.slane %v110, 1
    %v355 = vrot.slane %v111, 1
    %vm356 = vcmp.lt.s32.totalorder %v119, 7
    %v357 = vsel %vm356, %v354, %v355
    %v358 = vsel %vm356, %v353, %v354
    %v359 = vsel %vm356, %v352, %v353
    %v360 = vsel %vm356, %v351, %v352
    %v361 = vsel %vm356, %v350, %v351
    %v362 = vsel %vm356, %v355, %v350
    %s363 = scalar_lea.vmem [#allocation7], 256
    %v364 = vld [vmem:[%s363] sm:$0xff]
    %v365 = vld [vmem:[%s363 + $0x8] sm:$0xff]
    %v366 = vld [vmem:[%s363 + $0x10] sm:$0xff]
    %v367 = vld [vmem:[%s363 + $0x18] sm:$0xff]
    %v368 = vld [vmem:[%s363 + $0x20] sm:$0xff]
    %v369 = vld [vmem:[%s363 + $0x28] sm:$0xff]
    %v370 = vld [vmem:[%s363 + $0x30] sm:$0xff]
    %v371 = vld [vmem:[%s363 + $0x38] sm:$0xff]
    %v372 = vld [vmem:[%s363 + $0x40] sm:$0xff]
    %v373 = vld [vmem:[%s363 + $0x48] sm:$0xff]
    %v374 = vld [vmem:[%s363 + $0x50] sm:$0xff]
    %v375 = vld [vmem:[%s363 + $0x58] sm:$0xff]
    %v376 = vld [vmem:[%s363 + $0x60] sm:$0xff]
    %v377 = vld [vmem:[%s363 + $0x68] sm:$0xff]
    %v378 = vld [vmem:[%s363 + $0x70] sm:$0xff]
    %v379 = vld [vmem:[%s363 + $0x78] sm:$0xff]
    %380 = vmatprep.subr.mxu0 0.0
    %381 = vmatpush1.msra.mxu0 %v364
    %382 = vmatprep.subr.mxu0 0.0
    %383 = vmatpush1.msra.mxu0 %v365
    %384 = vmatprep.subr.mxu0 0.0
    %385 = vmatpush1.msra.mxu0 %v366
    %386 = vmatprep.subr.mxu0 0.0
    %387 = vmatpush1.msra.mxu0 %v367
    %388 = vmatprep.subr.mxu0 0.0
    %389 = vmatpush1.msra.mxu0 %v368
    %390 = vmatprep.subr.mxu0 0.0
    %391 = vmatpush1.msra.mxu0 %v369
    %392 = vmatprep.subr.mxu0 0.0
    %393 = vmatpush1.msra.mxu0 %v370
    %394 = vmatprep.subr.mxu0 0.0
    %395 = vmatpush1.msra.mxu0 %v371
    %396 = vmatprep.subr.mxu0 0.0
    %397 = vmatpush1.msra.mxu0 %v372
    %398 = vmatprep.subr.mxu0 0.0
    %399 = vmatpush1.msra.mxu0 %v373
    %400 = vmatprep.subr.mxu0 0.0
    %401 = vmatpush1.msra.mxu0 %v374
    %402 = vmatprep.subr.mxu0 0.0
    %403 = vmatpush1.msra.mxu0 %v375
    %404 = vmatprep.subr.mxu0 0.0
    %405 = vmatpush1.msra.mxu0 %v376
    %406 = vmatprep.subr.mxu0 0.0
    %407 = vmatpush1.msra.mxu0 %v377
    %408 = vmatprep.subr.mxu0 0.0
    %409 = vmatpush1.msra.mxu0 %v378
    %410 = vmatprep.subr.mxu0 0.0
    %411 = vmatpush1.msra.mxu0 %v379
    %412 = vmatprep.subr.mxu0 0.0
    %413 = vmatpush1.msra.mxu0 0.0
    %414 = vmatprep.subr.mxu0 0.0
    %415 = vmatpush1.msra.mxu0 0.0
    %416 = vmatprep.subr.mxu0 0.0
    %417 = vmatpush1.msra.mxu0 0.0
    %418 = vmatprep.subr.mxu0 0.0
    %419 = vmatpush1.msra.mxu0 0.0
    %420 = vmatprep.subr.mxu0 0.0
    %421 = vmatpush1.msra.mxu0 0.0
    %422 = vmatprep.subr.mxu0 0.0
    %423 = vmatpush1.msra.mxu0 0.0
    %424 = vmatprep.subr.mxu0 0.0
    %425 = vmatpush1.msra.mxu0 0.0
    %426 = vmatprep.subr.mxu0 0.0
    %427 = vmatpush1.msra.mxu0 0.0
    %428 = vmatprep.subr.mxu0 0.0
    %429 = vmatpush1.msra.mxu0 0.0
    %430 = vmatprep.subr.mxu0 0.0
    %431 = vmatpush1.msra.mxu0 0.0
    %432 = vmatprep.subr.mxu0 0.0
    %433 = vmatpush1.msra.mxu0 0.0
    %434 = vmatprep.subr.mxu0 0.0
    %435 = vmatpush1.msra.mxu0 0.0
    %436 = vmatprep.subr.mxu0 0.0
    %437 = vmatpush1.msra.mxu0 0.0
    %438 = vmatprep.subr.mxu0 0.0
    %439 = vmatpush1.msra.mxu0 0.0
    %440 = vmatprep.subr.mxu0 0.0
    %441 = vmatpush1.msra.mxu0 0.0
    %442 = vmatprep.subr.mxu0 0.0
    %443 = vmatpush1.msra.mxu0 0.0
    %444 = vmatprep.mubr.f32.mxu0 0.0
    %445 = vmatmul.mubr.f32.gmra.mrb[0].mxu0 %v361
    %v446 = vpop.f32.mrb[0].mxu0
    %v447 = vadd.f32 0.0, %v446
    %v448 = vpop.f32.mrb[0].mxu0
    %449 = vmatprep.mubr.f32.mxu0 0.0
    %450 = vmatmul.mubr.f32.gmra.mrb[0].mxu0 %v360
    %v451 = vpop.f32.mrb[0].mxu0
    %v452 = vadd.f32 0.0, %v451
    %v453 = vpop.f32.mrb[0].mxu0
    %454 = vmatprep.mubr.f32.mxu0 0.0
    %455 = vmatmul.mubr.f32.gmra.mrb[0].mxu0 %v359
    %v456 = vpop.f32.mrb[0].mxu0
    %v457 = vadd.f32 0.0, %v456
    %v458 = vpop.f32.mrb[0].mxu0
    %459 = vmatprep.mubr.f32.mxu0 0.0
    %460 = vmatmul.mubr.f32.gmra.mrb[0].mxu0 %v358
    %v461 = vpop.f32.mrb[0].mxu0
    %v462 = vadd.f32 0.0, %v461
    %v463 = vpop.f32.mrb[0].mxu0
    %464 = vmatprep.mubr.f32.mxu0 0.0
    %465 = vmatmul.mubr.f32.gmra.mrb[0].mxu0 %v357
    %v466 = vpop.f32.mrb[0].mxu0
    %v467 = vadd.f32 0.0, %v466
    %v468 = vpop.f32.mrb[0].mxu0
    %469 = vmatprep.mubr.f32.mxu0 0.0
    %470 = vmatmul.mubr.f32.gmra.mrb[0].mxu0 %v362
    %v471 = vpop.f32.mrb[0].mxu0
    %v472 = vadd.f32 0.0, %v471
    %v473 = vpop.f32.mrb[0].mxu0
    %474 = vdwg.mxu0
    %v475 = vadd.f32 %v322, %v447
    %v476 = vadd.f32 %v327, %v452
    %v477 = vadd.f32 %v332, %v457
    %v478 = vadd.f32 %v337, %v462
    %v479 = vadd.f32 %v342, %v467
    %v480 = vadd.f32 %v347, %v472
    %v481 = vld [vmem:[%s2] sm:$0x1]
    %v483 = vlaneseq
    %v484 = vshrl.u32 %v483, 7
    %v485 = vsub.s32 0, %v484
    %v486 = vrot.slane %v481, %v485
    %v488 = vadd.f32 %v475, %v486
    %v489 = vadd.f32 %v476, %v486
    %v490 = vadd.f32 %v477, %v486
    %v491 = vadd.f32 %v478, %v486
    %v492 = vadd.f32 %v479, %v486
    %v493 = vadd.f32 %v480, %v486
    %v494 = vmax.f32 %v488, 0.0
    %v495 = vmax.f32 %v489, 0.0
    %v496 = vmax.f32 %v490, 0.0
    %v497 = vmax.f32 %v491, 0.0
    %v498 = vmax.f32 %v492, 0.0
    %v499 = vmax.f32 %v493, 0.0
    %v500 = vld [vmem:[%s3] sm:$0x1]
    %v502 = vlaneseq
    %v503 = vshrl.u32 %v502, 7
    %v504 = vsub.s32 0, %v503
    %v505 = vrot.slane %v500, %v504
    %v507 = vmul.f32 %v494, %v505
    %v508 = vmul.f32 %v495, %v505
    %v509 = vmul.f32 %v496, %v505
    %v510 = vmul.f32 %v497, %v505
    %v511 = vmul.f32 %v498, %v505
    %v512 = vmul.f32 %v499, %v505
    %v513 = vld [vmem:[%s4] sm:$0x1]
    %v515 = vlaneseq
    %v516 = vshrl.u32 %v515, 7
    %v517 = vsub.s32 0, %v516
    %v518 = vrot.slane %v513, %v517
    %v520 = vadd.f32 %v507, %v518
    %v521 = vadd.f32 %v508, %v518
    %v522 = vadd.f32 %v509, %v518
    %v523 = vadd.f32 %v510, %v518
    %v524 = vadd.f32 %v511, %v518
    %v525 = vadd.f32 %v512, %v518
    %v526 = vld [vmem:[%s5] sm:$0xff]
    %v527 = vld [vmem:[%s5 + $0x8] sm:$0xff]
    %v528 = vld [vmem:[%s5 + $0x10] sm:$0xff]
    %v529 = vld [vmem:[%s5 + $0x18] sm:$0xff]
    %v530 = vld [vmem:[%s5 + $0x20] sm:$0xff]
    %v531 = vld [vmem:[%s5 + $0x28] sm:$0xff]
    %533 = vset.pattern.permute.xlu0 0
    %534 = vperm.xlu0 %533, %v526
    %v535 = vpop.permute.xlu0 %534
    %538 = vset.pattern.permute.xlu0 0
    %539 = vperm.xlu0 %538, %v527
    %v540 = vpop.permute.xlu0 %539
    %543 = vset.pattern.permute.xlu0 0
    %544 = vperm.xlu0 %543, %v528
    %v545 = vpop.permute.xlu0 %544
    %548 = vset.pattern.permute.xlu0 0
    %549 = vperm.xlu0 %548, %v529
    %v550 = vpop.permute.xlu0 %549
    %553 = vset.pattern.permute.xlu0 0
    %554 = vperm.xlu0 %553, %v530
    %v555 = vpop.permute.xlu0 %554
    %558 = vset.pattern.permute.xlu0 0
    %559 = vperm.xlu0 %558, %v531
    %v560 = vpop.permute.xlu0 %559
    %v562 = vmul.f32 %v520, %v535
    %v563 = vmul.f32 %v521, %v540
    %v564 = vmul.f32 %v522, %v545
    %v565 = vmul.f32 %v523, %v550
    %v566 = vmul.f32 %v524, %v555
    %v567 = vmul.f32 %v525, %v560
    %568 = vst [vmem:[#allocation2] sm:$0xff] %v562
    %569 = vst [vmem:[#allocation2 + $0x8] sm:$0xff] %v563
    %570 = vst [vmem:[#allocation2 + $0x10] sm:$0xff] %v564
    %571 = vst [vmem:[#allocation2 + $0x18] sm:$0xff] %v565
    %572 = vst [vmem:[#allocation2 + $0x20] sm:$0xff] %v566
    %573 = vst [vmem:[#allocation2 + $0x28] sm:$0xff] %v567
    %v574 = vld [vmem:[#allocation2] sm:$0xff]
    %v575 = vld [vmem:[#allocation2 + $0x8] sm:$0xff]
    %v576 = vld [vmem:[#allocation2 + $0x10] sm:$0xff]
    %v577 = vld [vmem:[#allocation2 + $0x18] sm:$0xff]
    %v578 = vld [vmem:[#allocation2 + $0x20] sm:$0xff]
    %v579 = vld [vmem:[#allocation2 + $0x28] sm:$0xff]
    %v580 = vrot.slane %v574, 7
    %v581 = vrot.slane %v575, 7
    %v582 = vrot.slane %v576, 7
    %v583 = vrot.slane %v577, 7
    %v584 = vrot.slane %v578, 7
    %v585 = vrot.slane %v579, 7
    %v586 = vsel %vm120, %v584, %v585
    %v587 = vsel %vm120, %v583, %v584
    %v588 = vsel %vm120, %v582, %v583
    %v589 = vsel %vm120, %v581, %v582
    %v590 = vsel %vm120, %v580, %v581
    %v591 = vsel %vm120, %v585, %v580
    %v592 = vld [vmem:[#allocation9] sm:$0xff]
    %v593 = vld [vmem:[#allocation9 + $0x8] sm:$0xff]
    %v594 = vld [vmem:[#allocation9 + $0x10] sm:$0xff]
    %v595 = vld [vmem:[#allocation9 + $0x18] sm:$0xff]
    %v596 = vld [vmem:[#allocation9 + $0x20] sm:$0xff]
    %v597 = vld [vmem:[#allocation9 + $0x28] sm:$0xff]
    %v598 = vld [vmem:[#allocation9 + $0x30] sm:$0xff]
    %v599 = vld [vmem:[#allocation9 + $0x38] sm:$0xff]
    %v600 = vld [vmem:[#allocation9 + $0x40] sm:$0xff]
    %v601 = vld [vmem:[#allocation9 + $0x48] sm:$0xff]
    %v602 = vld [vmem:[#allocation9 + $0x50] sm:$0xff]
    %v603 = vld [vmem:[#allocation9 + $0x58] sm:$0xff]
    %v604 = vld [vmem:[#allocation9 + $0x60] sm:$0xff]
    %v605 = vld [vmem:[#allocation9 + $0x68] sm:$0xff]
    %v606 = vld [vmem:[#allocation9 + $0x70] sm:$0xff]
    %v607 = vld [vmem:[#allocation9 + $0x78] sm:$0xff]
    %s608 = scalar_lea.vmem [#allocation9], 128
    %v609 = vld [vmem:[%s608] sm:$0xff]
    %v610 = vld [vmem:[%s608 + $0x8] sm:$0xff]
    %v611 = vld [vmem:[%s608 + $0x10] sm:$0xff]
    %v612 = vld [vmem:[%s608 + $0x18] sm:$0xff]
    %v613 = vld [vmem:[%s608 + $0x20] sm:$0xff]
    %v614 = vld [vmem:[%s608 + $0x28] sm:$0xff]
    %v615 = vld [vmem:[%s608 + $0x30] sm:$0xff]
    %v616 = vld [vmem:[%s608 + $0x38] sm:$0xff]
    %v617 = vld [vmem:[%s608 + $0x40] sm:$0xff]
    %v618 = vld [vmem:[%s608 + $0x48] sm:$0xff]
    %v619 = vld [vmem:[%s608 + $0x50] sm:$0xff]
    %v620 = vld [vmem:[%s608 + $0x58] sm:$0xff]
    %v621 = vld [vmem:[%s608 + $0x60] sm:$0xff]
    %v622 = vld [vmem:[%s608 + $0x68] sm:$0xff]
    %v623 = vld [vmem:[%s608 + $0x70] sm:$0xff]
    %v624 = vld [vmem:[%s608 + $0x78] sm:$0xff]
    %625 = vmatprep.subr.mxu0 0.0
    %626 = vmatpush1.msra.mxu0 %v609
    %627 = vmatprep.subr.mxu0 0.0
    %628 = vmatpush1.msra.mxu0 %v610
    %629 = vmatprep.subr.mxu0 0.0
    %630 = vmatpush1.msra.mxu0 %v611
    %631 = vmatprep.subr.mxu0 0.0
    %632 = vmatpush1.msra.mxu0 %v612
    %633 = vmatprep.subr.mxu0 0.0
    %634 = vmatpush1.msra.mxu0 %v613
    %635 = vmatprep.subr.mxu0 0.0
    %636 = vmatpush1.msra.mxu0 %v614
    %637 = vmatprep.subr.mxu0 0.0
    %638 = vmatpush1.msra.mxu0 %v615
    %639 = vmatprep.subr.mxu0 0.0
    %640 = vmatpush1.msra.mxu0 %v616
    %641 = vmatprep.subr.mxu0 0.0
    %642 = vmatpush1.msra.mxu0 %v617
    %643 = vmatprep.subr.mxu0 0.0
    %644 = vmatpush1.msra.mxu0 %v618
    %645 = vmatprep.subr.mxu0 0.0
    %646 = vmatpush1.msra.mxu0 %v619
    %647 = vmatprep.subr.mxu0 0.0
    %648 = vmatpush1.msra.mxu0 %v620
    %649 = vmatprep.subr.mxu0 0.0
    %650 = vmatpush1.msra.mxu0 %v621
    %651 = vmatprep.subr.mxu0 0.0
    %652 = vmatpush1.msra.mxu0 %v622
    %653 = vmatprep.subr.mxu0 0.0
    %654 = vmatpush1.msra.mxu0 %v623
    %655 = vmatprep.subr.mxu0 0.0
    %656 = vmatpush1.msra.mxu0 %v624
    %657 = vmatprep.subr.mxu0 0.0
    %658 = vmatpush1.msra.mxu0 0.0
    %659 = vmatprep.subr.mxu0 0.0
    %660 = vmatpush1.msra.mxu0 0.0
    %661 = vmatprep.subr.mxu0 0.0
    %662 = vmatpush1.msra.mxu0 0.0
    %663 = vmatprep.subr.mxu0 0.0
    %664 = vmatpush1.msra.mxu0 0.0
    %665 = vmatprep.subr.mxu0 0.0
    %666 = vmatpush1.msra.mxu0 0.0
    %667 = vmatprep.subr.mxu0 0.0
    %668 = vmatpush1.msra.mxu0 0.0
    %669 = vmatprep.subr.mxu0 0.0
    %670 = vmatpush1.msra.mxu0 0.0
    %671 = vmatprep.subr.mxu0 0.0
    %672 = vmatpush1.msra.mxu0 0.0
    %673 = vmatprep.subr.mxu0 0.0
    %674 = vmatpush1.msra.mxu0 0.0
    %675 = vmatprep.subr.mxu0 0.0
    %676 = vmatpush1.msra.mxu0 0.0
    %677 = vmatprep.subr.mxu0 0.0
    %678 = vmatpush1.msra.mxu0 0.0
    %679 = vmatprep.subr.mxu0 0.0
    %680 = vmatpush1.msra.mxu0 0.0
    %681 = vmatprep.subr.mxu0 0.0
    %682 = vmatpush1.msra.mxu0 0.0
    %683 = vmatprep.subr.mxu0 0.0
    %684 = vmatpush1.msra.mxu0 0.0
    %685 = vmatprep.subr.mxu0 0.0
    %686 = vmatpush1.msra.mxu0 0.0
    %687 = vmatprep.subr.mxu0 0.0
    %688 = vmatpush1.msra.mxu0 0.0
    %689 = vmatprep.mubr.f32.mxu0 0.0
    %690 = vmatmul.mubr.f32.gmra.mrb[0].mxu0 %v574
    %v691 = vpop.f32.mrb[0].mxu0
    %v692 = vadd.f32 0.0, %v691
    %v693 = vpop.f32.mrb[0].mxu0
    %694 = vmatprep.mubr.f32.mxu0 0.0
    %695 = vmatmul.mubr.f32.gmra.mrb[0].mxu0 %v575
    %v696 = vpop.f32.mrb[0].mxu0
    %v697 = vadd.f32 0.0, %v696
    %v698 = vpop.f32.mrb[0].mxu0
    %699 = vmatprep.mubr.f32.mxu0 0.0
    %700 = vmatmul.mubr.f32.gmra.mrb[0].mxu0 %v576
    %v701 = vpop.f32.mrb[0].mxu0
    %v702 = vadd.f32 0.0, %v701
    %v703 = vpop.f32.mrb[0].mxu0
    %704 = vmatprep.mubr.f32.mxu0 0.0
    %705 = vmatmul.mubr.f32.gmra.mrb[0].mxu0 %v577
    %v706 = vpop.f32.mrb[0].mxu0
    %v707 = vadd.f32 0.0, %v706
    %v708 = vpop.f32.mrb[0].mxu0
    %709 = vmatprep.mubr.f32.mxu0 0.0
    %710 = vmatmul.mubr.f32.gmra.mrb[0].mxu0 %v578
    %v711 = vpop.f32.mrb[0].mxu0
    %v712 = vadd.f32 0.0, %v711
    %v713 = vpop.f32.mrb[0].mxu0
    %714 = vmatprep.mubr.f32.mxu0 0.0
    %715 = vmatmul.mubr.f32.gmra.mrb[0].mxu0 %v579
    %v716 = vpop.f32.mrb[0].mxu0
    %v717 = vadd.f32 0.0, %v716
    %v718 = vpop.f32.mrb[0].mxu0
    %719 = vdwg.mxu0
    %720 = vmatprep.subr.mxu0 0.0
    %721 = vmatpush1.msra.mxu0 %v592
    %722 = vmatprep.subr.mxu0 0.0
    %723 = vmatpush1.msra.mxu0 %v593
    %724 = vmatprep.subr.mxu0 0.0
    %725 = vmatpush1.msra.mxu0 %v594
    %726 = vmatprep.subr.mxu0 0.0
    %727 = vmatpush1.msra.mxu0 %v595
    %728 = vmatprep.subr.mxu0 0.0
    %729 = vmatpush1.msra.mxu0 %v596
    %730 = vmatprep.subr.mxu0 0.0
    %731 = vmatpush1.msra.mxu0 %v597
    %732 = vmatprep.subr.mxu0 0.0
    %733 = vmatpush1.msra.mxu0 %v598
    %734 = vmatprep.subr.mxu0 0.0
    %735 = vmatpush1.msra.mxu0 %v599
    %736 = vmatprep.subr.mxu0 0.0
    %737 = vmatpush1.msra.mxu0 %v600
    %738 = vmatprep.subr.mxu0 0.0
    %739 = vmatpush1.msra.mxu0 %v601
    %740 = vmatprep.subr.mxu0 0.0
    %741 = vmatpush1.msra.mxu0 %v602
    %742 = vmatprep.subr.mxu0 0.0
    %743 = vmatpush1.msra.mxu0 %v603
    %744 = vmatprep.subr.mxu0 0.0
    %745 = vmatpush1.msra.mxu0 %v604
    %746 = vmatprep.subr.mxu0 0.0
    %747 = vmatpush1.msra.mxu0 %v605
    %748 = vmatprep.subr.mxu0 0.0
    %749 = vmatpush1.msra.mxu0 %v606
    %750 = vmatprep.subr.mxu0 0.0
    %751 = vmatpush1.msra.mxu0 %v607
    %752 = vmatprep.subr.mxu0 0.0
    %753 = vmatpush1.msra.mxu0 0.0
    %754 = vmatprep.subr.mxu0 0.0
    %755 = vmatpush1.msra.mxu0 0.0
    %756 = vmatprep.subr.mxu0 0.0
    %757 = vmatpush1.msra.mxu0 0.0
    %758 = vmatprep.subr.mxu0 0.0
    %759 = vmatpush1.msra.mxu0 0.0
    %760 = vmatprep.subr.mxu0 0.0
    %761 = vmatpush1.msra.mxu0 0.0
    %762 = vmatprep.subr.mxu0 0.0
    %763 = vmatpush1.msra.mxu0 0.0
    %764 = vmatprep.subr.mxu0 0.0
    %765 = vmatpush1.msra.mxu0 0.0
    %766 = vmatprep.subr.mxu0 0.0
    %767 = vmatpush1.msra.mxu0 0.0
    %768 = vmatprep.subr.mxu0 0.0
    %769 = vmatpush1.msra.mxu0 0.0
    %770 = vmatprep.subr.mxu0 0.0
    %771 = vmatpush1.msra.mxu0 0.0
    %772 = vmatprep.subr.mxu0 0.0
    %773 = vmatpush1.msra.mxu0 0.0
    %774 = vmatprep.subr.mxu0 0.0
    %775 = vmatpush1.msra.mxu0 0.0
    %776 = vmatprep.subr.mxu0 0.0
    %777 = vmatpush1.msra.mxu0 0.0
    %778 = vmatprep.subr.mxu0 0.0
    %779 = vmatpush1.msra.mxu0 0.0
    %780 = vmatprep.subr.mxu0 0.0
    %781 = vmatpush1.msra.mxu0 0.0
    %782 = vmatprep.subr.mxu0 0.0
    %783 = vmatpush1.msra.mxu0 0.0
    %784 = vmatprep.mubr.f32.mxu0 0.0
    %785 = vmatmul.mubr.f32.gmra.mrb[0].mxu0 %v591
    %v786 = vpop.f32.mrb[0].mxu0
    %v787 = vadd.f32 %v692, %v786
    %v788 = vpop.f32.mrb[0].mxu0
    %789 = vmatprep.mubr.f32.mxu0 0.0
    %790 = vmatmul.mubr.f32.gmra.mrb[0].mxu0 %v590
    %v791 = vpop.f32.mrb[0].mxu0
    %v792 = vadd.f32 %v697, %v791
    %v793 = vpop.f32.mrb[0].mxu0
    %794 = vmatprep.mubr.f32.mxu0 0.0
    %795 = vmatmul.mubr.f32.gmra.mrb[0].mxu0 %v589
    %v796 = vpop.f32.mrb[0].mxu0
    %v797 = vadd.f32 %v702, %v796
    %v798 = vpop.f32.mrb[0].mxu0
    %799 = vmatprep.mubr.f32.mxu0 0.0
    %800 = vmatmul.mubr.f32.gmra.mrb[0].mxu0 %v588
    %v801 = vpop.f32.mrb[0].mxu0
    %v802 = vadd.f32 %v707, %v801
    %v803 = vpop.f32.mrb[0].mxu0
    %804 = vmatprep.mubr.f32.mxu0 0.0
    %805 = vmatmul.mubr.f32.gmra.mrb[0].mxu0 %v587
    %v806 = vpop.f32.mrb[0].mxu0
    %v807 = vadd.f32 %v712, %v806
    %v808 = vpop.f32.mrb[0].mxu0
    %809 = vmatprep.mubr.f32.mxu0 0.0
    %810 = vmatmul.mubr.f32.gmra.mrb[0].mxu0 %v586
    %v811 = vpop.f32.mrb[0].mxu0
    %v812 = vadd.f32 %v717, %v811
    %v813 = vpop.f32.mrb[0].mxu0
    %814 = vdwg.mxu0
    %v815 = vrot.slane %v574, 1
    %v816 = vrot.slane %v575, 1
    %v817 = vrot.slane %v576, 1
    %v818 = vrot.slane %v577, 1
    %v819 = vrot.slane %v578, 1
    %v820 = vrot.slane %v579, 1
    %v821 = vsel %vm356, %v819, %v820
    %v822 = vsel %vm356, %v818, %v819
    %v823 = vsel %vm356, %v817, %v818
    %v824 = vsel %vm356, %v816, %v817
    %v825 = vsel %vm356, %v815, %v816
    %v826 = vsel %vm356, %v820, %v815
    %s827 = scalar_lea.vmem [#allocation9], 256
    %v828 = vld [vmem:[%s827] sm:$0xff]
    %v829 = vld [vmem:[%s827 + $0x8] sm:$0xff]
    %v830 = vld [vmem:[%s827 + $0x10] sm:$0xff]
    %v831 = vld [vmem:[%s827 + $0x18] sm:$0xff]
    %v832 = vld [vmem:[%s827 + $0x20] sm:$0xff]
    %v833 = vld [vmem:[%s827 + $0x28] sm:$0xff]
    %v834 = vld [vmem:[%s827 + $0x30] sm:$0xff]
    %v835 = vld [vmem:[%s827 + $0x38] sm:$0xff]
    %v836 = vld [vmem:[%s827 + $0x40] sm:$0xff]
    %v837 = vld [vmem:[%s827 + $0x48] sm:$0xff]
    %v838 = vld [vmem:[%s827 + $0x50] sm:$0xff]
    %v839 = vld [vmem:[%s827 + $0x58] sm:$0xff]
    %v840 = vld [vmem:[%s827 + $0x60] sm:$0xff]
    %v841 = vld [vmem:[%s827 + $0x68] sm:$0xff]
    %v842 = vld [vmem:[%s827 + $0x70] sm:$0xff]
    %v843 = vld [vmem:[%s827 + $0x78] sm:$0xff]
    %844 = vmatprep.subr.mxu0 0.0
    %845 = vmatpush1.msra.mxu0 %v828
    %846 = vmatprep.subr.mxu0 0.0
    %847 = vmatpush1.msra.mxu0 %v829
    %848 = vmatprep.subr.mxu0 0.0
    %849 = vmatpush1.msra.mxu0 %v830
    %850 = vmatprep.subr.mxu0 0.0
    %851 = vmatpush1.msra.mxu0 %v831
    %852 = vmatprep.subr.mxu0 0.0
    %853 = vmatpush1.msra.mxu0 %v832
    %854 = vmatprep.subr.mxu0 0.0
    %855 = vmatpush1.msra.mxu0 %v833
    %856 = vmatprep.subr.mxu0 0.0
    %857 = vmatpush1.msra.mxu0 %v834
    %858 = vmatprep.subr.mxu0 0.0
    %859 = vmatpush1.msra.mxu0 %v835
    %860 = vmatprep.subr.mxu0 0.0
    %861 = vmatpush1.msra.mxu0 %v836
    %862 = vmatprep.subr.mxu0 0.0
    %863 = vmatpush1.msra.mxu0 %v837
    %864 = vmatprep.subr.mxu0 0.0
    %865 = vmatpush1.msra.mxu0 %v838
    %866 = vmatprep.subr.mxu0 0.0
    %867 = vmatpush1.msra.mxu0 %v839
    %868 = vmatprep.subr.mxu0 0.0
    %869 = vmatpush1.msra.mxu0 %v840
    %870 = vmatprep.subr.mxu0 0.0
    %871 = vmatpush1.msra.mxu0 %v841
    %872 = vmatprep.subr.mxu0 0.0
    %873 = vmatpush1.msra.mxu0 %v842
    %874 = vmatprep.subr.mxu0 0.0
    %875 = vmatpush1.msra.mxu0 %v843
    %876 = vmatprep.subr.mxu0 0.0
    %877 = vmatpush1.msra.mxu0 0.0
    %878 = vmatprep.subr.mxu0 0.0
    %879 = vmatpush1.msra.mxu0 0.0
    %880 = vmatprep.subr.mxu0 0.0
    %881 = vmatpush1.msra.mxu0 0.0
    %882 = vmatprep.subr.mxu0 0.0
    %883 = vmatpush1.msra.mxu0 0.0
    %884 = vmatprep.subr.mxu0 0.0
    %885 = vmatpush1.msra.mxu0 0.0
    %886 = vmatprep.subr.mxu0 0.0
    %887 = vmatpush1.msra.mxu0 0.0
    %888 = vmatprep.subr.mxu0 0.0
    %889 = vmatpush1.msra.mxu0 0.0
    %890 = vmatprep.subr.mxu0 0.0
    %891 = vmatpush1.msra.mxu0 0.0
    %892 = vmatprep.subr.mxu0 0.0
    %893 = vmatpush1.msra.mxu0 0.0
    %894 = vmatprep.subr.mxu0 0.0
    %895 = vmatpush1.msra.mxu0 0.0
    %896 = vmatprep.subr.mxu0 0.0
    %897 = vmatpush1.msra.mxu0 0.0
    %898 = vmatprep.subr.mxu0 0.0
    %899 = vmatpush1.msra.mxu0 0.0
    %900 = vmatprep.subr.mxu0 0.0
    %901 = vmatpush1.msra.mxu0 0.0
    %902 = vmatprep.subr.mxu0 0.0
    %903 = vmatpush1.msra.mxu0 0.0
    %904 = vmatprep.subr.mxu0 0.0
    %905 = vmatpush1.msra.mxu0 0.0
    %906 = vmatprep.subr.mxu0 0.0
    %907 = vmatpush1.msra.mxu0 0.0
    %908 = vmatprep.mubr.f32.mxu0 0.0
    %909 = vmatmul.mubr.f32.gmra.mrb[0].mxu0 %v825
    %v910 = vpop.f32.mrb[0].mxu0
    %v911 = vadd.f32 0.0, %v910
    %v912 = vpop.f32.mrb[0].mxu0
    %913 = vmatprep.mubr.f32.mxu0 0.0
    %914 = vmatmul.mubr.f32.gmra.mrb[0].mxu0 %v824
    %v915 = vpop.f32.mrb[0].mxu0
    %v916 = vadd.f32 0.0, %v915
    %v917 = vpop.f32.mrb[0].mxu0
    %918 = vmatprep.mubr.f32.mxu0 0.0
    %919 = vmatmul.mubr.f32.gmra.mrb[0].mxu0 %v823
    %v920 = vpop.f32.mrb[0].mxu0
    %v921 = vadd.f32 0.0, %v920
    %v922 = vpop.f32.mrb[0].mxu0
    %923 = vmatprep.mubr.f32.mxu0 0.0
    %924 = vmatmul.mubr.f32.gmra.mrb[0].mxu0 %v822
    %v925 = vpop.f32.mrb[0].mxu0
    %v926 = vadd.f32 0.0, %v925
    %v927 = vpop.f32.mrb[0].mxu0
    %928 = vmatprep.mubr.f32.mxu0 0.0
    %929 = vmatmul.mubr.f32.gmra.mrb[0].mxu0 %v821
    %v930 = vpop.f32.mrb[0].mxu0
    %v931 = vadd.f32 0.0, %v930
    %v932 = vpop.f32.mrb[0].mxu0
    %933 = vmatprep.mubr.f32.mxu0 0.0
    %934 = vmatmul.mubr.f32.gmra.mrb[0].mxu0 %v826
    %v935 = vpop.f32.mrb[0].mxu0
    %v936 = vadd.f32 0.0, %v935
    %v937 = vpop.f32.mrb[0].mxu0
    %938 = vdwg.mxu0
    %v939 = vadd.f32 %v787, %v911
    %v940 = vadd.f32 %v792, %v916
    %v941 = vadd.f32 %v797, %v921
    %v942 = vadd.f32 %v802, %v926
    %v943 = vadd.f32 %v807, %v931
    %v944 = vadd.f32 %v812, %v936
    %v945 = vld [vmem:[%s7] sm:$0x1]
    %v947 = vlaneseq
    %v948 = vshrl.u32 %v947, 7
    %v949 = vsub.s32 0, %v948
    %v950 = vrot.slane %v945, %v949
    %v952 = vadd.f32 %v939, %v950
    %v953 = vadd.f32 %v940, %v950
    %v954 = vadd.f32 %v941, %v950
    %v955 = vadd.f32 %v942, %v950
    %v956 = vadd.f32 %v943, %v950
    %v957 = vadd.f32 %v944, %v950
    %v958 = vmax.f32 %v952, 0.0
    %v959 = vmax.f32 %v953, 0.0
    %v960 = vmax.f32 %v954, 0.0
    %v961 = vmax.f32 %v955, 0.0
    %v962 = vmax.f32 %v956, 0.0
    %v963 = vmax.f32 %v957, 0.0
    %v964 = vld [vmem:[%s8] sm:$0x1]
    %v966 = vlaneseq
    %v967 = vshrl.u32 %v966, 7
    %v968 = vsub.s32 0, %v967
    %v969 = vrot.slane %v964, %v968
    %v971 = vmul.f32 %v958, %v969
    %v972 = vmul.f32 %v959, %v969
    %v973 = vmul.f32 %v960, %v969
    %v974 = vmul.f32 %v961, %v969
    %v975 = vmul.f32 %v962, %v969
    %v976 = vmul.f32 %v963, %v969
    %v977 = vld [vmem:[%s9] sm:$0x1]
    %v979 = vlaneseq
    %v980 = vshrl.u32 %v979, 7
    %v981 = vsub.s32 0, %v980
    %v982 = vrot.slane %v977, %v981
    %v984 = vadd.f32 %v971, %v982
    %v985 = vadd.f32 %v972, %v982
    %v986 = vadd.f32 %v973, %v982
    %v987 = vadd.f32 %v974, %v982
    %v988 = vadd.f32 %v975, %v982
    %v989 = vadd.f32 %v976, %v982
    %v990 = vld [vmem:[%s10] sm:$0xff]
    %v991 = vld [vmem:[%s10 + $0x8] sm:$0xff]
    %v992 = vld [vmem:[%s10 + $0x10] sm:$0xff]
    %v993 = vld [vmem:[%s10 + $0x18] sm:$0xff]
    %v994 = vld [vmem:[%s10 + $0x20] sm:$0xff]
    %v995 = vld [vmem:[%s10 + $0x28] sm:$0xff]
    %997 = vset.pattern.permute.xlu0 0
    %998 = vperm.xlu0 %997, %v990
    %v999 = vpop.permute.xlu0 %998
    %1002 = vset.pattern.permute.xlu0 0
    %1003 = vperm.xlu0 %1002, %v991
    %v1004 = vpop.permute.xlu0 %1003
    %1007 = vset.pattern.permute.xlu0 0
    %1008 = vperm.xlu0 %1007, %v992
    %v1009 = vpop.permute.xlu0 %1008
    %1012 = vset.pattern.permute.xlu0 0
    %1013 = vperm.xlu0 %1012, %v993
    %v1014 = vpop.permute.xlu0 %1013
    %1017 = vset.pattern.permute.xlu0 0
    %1018 = vperm.xlu0 %1017, %v994
    %v1019 = vpop.permute.xlu0 %1018
    %1022 = vset.pattern.permute.xlu0 0
    %1023 = vperm.xlu0 %1022, %v995
    %v1024 = vpop.permute.xlu0 %1023
    %v1026 = vmul.f32 %v984, %v999
    %v1027 = vmul.f32 %v985, %v1004
    %v1028 = vmul.f32 %v986, %v1009
    %v1029 = vmul.f32 %v987, %v1014
    %v1030 = vmul.f32 %v988, %v1019
    %v1031 = vmul.f32 %v989, %v1024
    %1032 = vst [vmem:[#allocation3] sm:$0xff] %v1026
    %1033 = vst [vmem:[#allocation3 + $0x8] sm:$0xff] %v1027
    %1034 = vst [vmem:[#allocation3 + $0x10] sm:$0xff] %v1028
    %1035 = vst [vmem:[#allocation3 + $0x18] sm:$0xff] %v1029
    %1036 = vst [vmem:[#allocation3 + $0x20] sm:$0xff] %v1030
    %1037 = vst [vmem:[#allocation3 + $0x28] sm:$0xff] %v1031
    %1038 = vst [vmem:[#allocation2] sm:$0xff] 0.0
    %1039 = vst [vmem:[#allocation2 + $0x8] sm:$0xff] 0.0
    %s1040 = scalar_lea.vmem [#allocation3], 1
    %v1041 = vld [vmem:[%s1040] ss:$3 sm:$0x1f]
    %s1042 = scalar_lea.vmem [#allocation3], 2
    %v1043 = vld [vmem:[%s1042] ss:$3 sm:$0x1f]
    %v1044 = vmax.f32 %v1041, %v1043
    %s1045 = scalar_lea.vmem [#allocation3], 3
    %v1046 = vld [vmem:[%s1045] ss:$3 sm:$0x1f]
    %v1047 = vmax.f32 %v1044, %v1046
    %1048 = vst [vmem:[#allocation2 + $0x1] sm:$0x1f] %v1047
    %s1049 = scalar_lea.vmem [#allocation3], 25
    %v1050 = vld [vmem:[%s1049] ss:$3 sm:$0x1f]
    %s1051 = scalar_lea.vmem [#allocation3], 26
    %v1052 = vld [vmem:[%s1051] ss:$3 sm:$0x1f]
    %v1053 = vmax.f32 %v1050, %v1052
    %s1054 = scalar_lea.vmem [#allocation3], 27
    %v1055 = vld [vmem:[%s1054] ss:$3 sm:$0x1f]
    %v1056 = vmax.f32 %v1053, %v1055
    %1057 = vst [vmem:[#allocation2 + $0x9] sm:$0x1f] %v1056
    %s1058 = scalar_lea.vmem [#allocation2], 1
    %v1059 = vld [vmem:[%s1058] ss:$8 sm:$0x3]
    %v1060 = vld [vmem:[#allocation10] sm:$0xff]
    %v1061 = vld [vmem:[#allocation10 + $0x8] sm:$0xff]
    %v1062 = vld [vmem:[#allocation10 + $0x10] sm:$0xff]
    %v1063 = vld [vmem:[#allocation10 + $0x18] sm:$0xff]
    %v1064 = vld [vmem:[#allocation10 + $0x20] sm:$0xff]
    %v1065 = vld [vmem:[#allocation10 + $0x28] sm:$0xff]
    %v1066 = vld [vmem:[#allocation10 + $0x30] sm:$0xff]
    %v1067 = vld [vmem:[#allocation10 + $0x38] sm:$0xff]
    %v1068 = vld [vmem:[#allocation10 + $0x40] sm:$0xff]
    %v1069 = vld [vmem:[#allocation10 + $0x48] sm:$0xff]
    %v1070 = vld [vmem:[#allocation10 + $0x50] sm:$0xff]
    %v1071 = vld [vmem:[#allocation10 + $0x58] sm:$0xff]
    %v1072 = vld [vmem:[#allocation10 + $0x60] sm:$0xff]
    %v1073 = vld [vmem:[#allocation10 + $0x68] sm:$0xff]
    %v1074 = vld [vmem:[#allocation10 + $0x70] sm:$0xff]
    %v1075 = vld [vmem:[#allocation10 + $0x78] sm:$0xff]
    %s1076 = scalar_lea.vmem [#allocation2], 2
    %v1077 = vld [vmem:[%s1076] ss:$8 sm:$0x3]
    %v1078 = vld [vmem:[#allocation10 + $0x80] sm:$0xff]
    %v1079 = vld [vmem:[#allocation10 + $0x88] sm:$0xff]
    %v1080 = vld [vmem:[#allocation10 + $0x90] sm:$0xff]
    %v1081 = vld [vmem:[#allocation10 + $0x98] sm:$0xff]
    %v1082 = vld [vmem:[#allocation10 + $0xa0] sm:$0xff]
    %v1083 = vld [vmem:[#allocation10 + $0xa8] sm:$0xff]
    %v1084 = vld [vmem:[#allocation10 + $0xb0] sm:$0xff]
    %v1085 = vld [vmem:[#allocation10 + $0xb8] sm:$0xff]
    %v1086 = vld [vmem:[#allocation10 + $0xc0] sm:$0xff]
    %v1087 = vld [vmem:[#allocation10 + $0xc8] sm:$0xff]
    %v1088 = vld [vmem:[#allocation10 + $0xd0] sm:$0xff]
    %v1089 = vld [vmem:[#allocation10 + $0xd8] sm:$0xff]
    %v1090 = vld [vmem:[#allocation10 + $0xe0] sm:$0xff]
    %v1091 = vld [vmem:[#allocation10 + $0xe8] sm:$0xff]
    %v1092 = vld [vmem:[#allocation10 + $0xf0] sm:$0xff]
    %v1093 = vld [vmem:[#allocation10 + $0xf8] sm:$0xff]
    %1094 = vmatprep.subr.mxu0 0.0
    %1095 = vmatpush1.msra.mxu0 %v1078
    %1096 = vmatprep.subr.mxu0 0.0
    %1097 = vmatpush1.msra.mxu0 %v1079
    %1098 = vmatprep.subr.mxu0 0.0
    %1099 = vmatpush1.msra.mxu0 %v1080
    %1100 = vmatprep.subr.mxu0 0.0
    %1101 = vmatpush1.msra.mxu0 %v1081
    %1102 = vmatprep.subr.mxu0 0.0
    %1103 = vmatpush1.msra.mxu0 %v1082
    %1104 = vmatprep.subr.mxu0 0.0
    %1105 = vmatpush1.msra.mxu0 %v1083
    %1106 = vmatprep.subr.mxu0 0.0
    %1107 = vmatpush1.msra.mxu0 %v1084
    %1108 = vmatprep.subr.mxu0 0.0
    %1109 = vmatpush1.msra.mxu0 %v1085
    %1110 = vmatprep.subr.mxu0 0.0
    %1111 = vmatpush1.msra.mxu0 %v1086
    %1112 = vmatprep.subr.mxu0 0.0
    %1113 = vmatpush1.msra.mxu0 %v1087
    %1114 = vmatprep.subr.mxu0 0.0
    %1115 = vmatpush1.msra.mxu0 %v1088
    %1116 = vmatprep.subr.mxu0 0.0
    %1117 = vmatpush1.msra.mxu0 %v1089
    %1118 = vmatprep.subr.mxu0 0.0
    %1119 = vmatpush1.msra.mxu0 %v1090
    %1120 = vmatprep.subr.mxu0 0.0
    %1121 = vmatpush1.msra.mxu0 %v1091
    %1122 = vmatprep.subr.mxu0 0.0
    %1123 = vmatpush1.msra.mxu0 %v1092
    %1124 = vmatprep.subr.mxu0 0.0
    %1125 = vmatpush1.msra.mxu0 %v1093
    %1126 = vmatprep.subr.mxu0 0.0
    %1127 = vmatpush1.msra.mxu0 0.0
    %1128 = vmatprep.subr.mxu0 0.0
    %1129 = vmatpush1.msra.mxu0 0.0
    %1130 = vmatprep.subr.mxu0 0.0
    %1131 = vmatpush1.msra.mxu0 0.0
    %1132 = vmatprep.subr.mxu0 0.0
    %1133 = vmatpush1.msra.mxu0 0.0
    %1134 = vmatprep.subr.mxu0 0.0
    %1135 = vmatpush1.msra.mxu0 0.0
    %1136 = vmatprep.subr.mxu0 0.0
    %1137 = vmatpush1.msra.mxu0 0.0
    %1138 = vmatprep.subr.mxu0 0.0
    %1139 = vmatpush1.msra.mxu0 0.0
    %1140 = vmatprep.subr.mxu0 0.0
    %1141 = vmatpush1.msra.mxu0 0.0
    %1142 = vmatprep.subr.mxu0 0.0
    %1143 = vmatpush1.msra.mxu0 0.0
    %1144 = vmatprep.subr.mxu0 0.0
    %1145 = vmatpush1.msra.mxu0 0.0
    %1146 = vmatprep.subr.mxu0 0.0
    %1147 = vmatpush1.msra.mxu0 0.0
    %1148 = vmatprep.subr.mxu0 0.0
    %1149 = vmatpush1.msra.mxu0 0.0
    %1150 = vmatprep.subr.mxu0 0.0
    %1151 = vmatpush1.msra.mxu0 0.0
    %1152 = vmatprep.subr.mxu0 0.0
    %1153 = vmatpush1.msra.mxu0 0.0
    %1154 = vmatprep.subr.mxu0 0.0
    %1155 = vmatpush1.msra.mxu0 0.0
    %1156 = vmatprep.subr.mxu0 0.0
    %1157 = vmatpush1.msra.mxu0 0.0
    %1158 = vmatprep.mubr.f32.mxu0 0.0
    %1159 = vmatmul.mubr.f32.gmra.mrb[0].mxu0 %v1077
    %v1160 = vpop.f32.mrb[0].mxu0
    %v1161 = vadd.f32 0.0, %v1160
    %v1162 = vpop.f32.mrb[0].mxu0
    %1163 = vdwg.mxu0
    %1164 = vmatprep.subr.mxu0 0.0
    %1165 = vmatpush1.msra.mxu0 %v1060
    %1166 = vmatprep.subr.mxu0 0.0
    %1167 = vmatpush1.msra.mxu0 %v1061
    %1168 = vmatprep.subr.mxu0 0.0
    %1169 = vmatpush1.msra.mxu0 %v1062
    %1170 = vmatprep.subr.mxu0 0.0
    %1171 = vmatpush1.msra.mxu0 %v1063
    %1172 = vmatprep.subr.mxu0 0.0
    %1173 = vmatpush1.msra.mxu0 %v1064
    %1174 = vmatprep.subr.mxu0 0.0
    %1175 = vmatpush1.msra.mxu0 %v1065
    %1176 = vmatprep.subr.mxu0 0.0
    %1177 = vmatpush1.msra.mxu0 %v1066
    %1178 = vmatprep.subr.mxu0 0.0
    %1179 = vmatpush1.msra.mxu0 %v1067
    %1180 = vmatprep.subr.mxu0 0.0
    %1181 = vmatpush1.msra.mxu0 %v1068
    %1182 = vmatprep.subr.mxu0 0.0
    %1183 = vmatpush1.msra.mxu0 %v1069
    %1184 = vmatprep.subr.mxu0 0.0
    %1185 = vmatpush1.msra.mxu0 %v1070
    %1186 = vmatprep.subr.mxu0 0.0
    %1187 = vmatpush1.msra.mxu0 %v1071
    %1188 = vmatprep.subr.mxu0 0.0
    %1189 = vmatpush1.msra.mxu0 %v1072
    %1190 = vmatprep.subr.mxu0 0.0
    %1191 = vmatpush1.msra.mxu0 %v1073
    %1192 = vmatprep.subr.mxu0 0.0
    %1193 = vmatpush1.msra.mxu0 %v1074
    %1194 = vmatprep.subr.mxu0 0.0
    %1195 = vmatpush1.msra.mxu0 %v1075
    %1196 = vmatprep.subr.mxu0 0.0
    %1197 = vmatpush1.msra.mxu0 0.0
    %1198 = vmatprep.subr.mxu0 0.0
    %1199 = vmatpush1.msra.mxu0 0.0
    %1200 = vmatprep.subr.mxu0 0.0
    %1201 = vmatpush1.msra.mxu0 0.0
    %1202 = vmatprep.subr.mxu0 0.0
    %1203 = vmatpush1.msra.mxu0 0.0
    %1204 = vmatprep.subr.mxu0 0.0
    %1205 = vmatpush1.msra.mxu0 0.0
    %1206 = vmatprep.subr.mxu0 0.0
    %1207 = vmatpush1.msra.mxu0 0.0
    %1208 = vmatprep.subr.mxu0 0.0
    %1209 = vmatpush1.msra.mxu0 0.0
    %1210 = vmatprep.subr.mxu0 0.0
    %1211 = vmatpush1.msra.mxu0 0.0
    %1212 = vmatprep.subr.mxu0 0.0
    %1213 = vmatpush1.msra.mxu0 0.0
    %1214 = vmatprep.subr.mxu0 0.0
    %1215 = vmatpush1.msra.mxu0 0.0
    %1216 = vmatprep.subr.mxu0 0.0
    %1217 = vmatpush1.msra.mxu0 0.0
    %1218 = vmatprep.subr.mxu0 0.0
    %1219 = vmatpush1.msra.mxu0 0.0
    %1220 = vmatprep.subr.mxu0 0.0
    %1221 = vmatpush1.msra.mxu0 0.0
    %1222 = vmatprep.subr.mxu0 0.0
    %1223 = vmatpush1.msra.mxu0 0.0
    %1224 = vmatprep.subr.mxu0 0.0
    %1225 = vmatpush1.msra.mxu0 0.0
    %1226 = vmatprep.subr.mxu0 0.0
    %1227 = vmatpush1.msra.mxu0 0.0
    %1228 = vmatprep.mubr.f32.mxu0 0.0
    %1229 = vmatmul.mubr.f32.gmra.mrb[0].mxu0 %v1059
    %v1230 = vpop.f32.mrb[0].mxu0
    %v1231 = vadd.f32 %v1161, %v1230
    %v1232 = vpop.f32.mrb[0].mxu0
    %1233 = vdwg.mxu0
    %s1234 = scalar_lea.vmem [#allocation2], 3
    %v1235 = vld [vmem:[%s1234] ss:$8 sm:$0x3]
    %v1236 = vld [vmem:[#allocation10 + $0x100] sm:$0xff]
    %v1237 = vld [vmem:[#allocation10 + $0x108] sm:$0xff]
    %v1238 = vld [vmem:[#allocation10 + $0x110] sm:$0xff]
    %v1239 = vld [vmem:[#allocation10 + $0x118] sm:$0xff]
    %v1240 = vld [vmem:[#allocation10 + $0x120] sm:$0xff]
    %v1241 = vld [vmem:[#allocation10 + $0x128] sm:$0xff]
    %v1242 = vld [vmem:[#allocation10 + $0x130] sm:$0xff]
    %v1243 = vld [vmem:[#allocation10 + $0x138] sm:$0xff]
    %v1244 = vld [vmem:[#allocation10 + $0x140] sm:$0xff]
    %v1245 = vld [vmem:[#allocation10 + $0x148] sm:$0xff]
    %v1246 = vld [vmem:[#allocation10 + $0x150] sm:$0xff]
    %v1247 = vld [vmem:[#allocation10 + $0x158] sm:$0xff]
    %v1248 = vld [vmem:[#allocation10 + $0x160] sm:$0xff]
    %v1249 = vld [vmem:[#allocation10 + $0x168] sm:$0xff]
    %v1250 = vld [vmem:[#allocation10 + $0x170] sm:$0xff]
    %v1251 = vld [vmem:[#allocation10 + $0x178] sm:$0xff]
    %1252 = vmatprep.subr.mxu0 0.0
    %1253 = vmatpush1.msra.mxu0 %v1236
    %1254 = vmatprep.subr.mxu0 0.0
    %1255 = vmatpush1.msra.mxu0 %v1237
    %1256 = vmatprep.subr.mxu0 0.0
    %1257 = vmatpush1.msra.mxu0 %v1238
    %1258 = vmatprep.subr.mxu0 0.0
    %1259 = vmatpush1.msra.mxu0 %v1239
    %1260 = vmatprep.subr.mxu0 0.0
    %1261 = vmatpush1.msra.mxu0 %v1240
    %1262 = vmatprep.subr.mxu0 0.0
    %1263 = vmatpush1.msra.mxu0 %v1241
    %1264 = vmatprep.subr.mxu0 0.0
    %1265 = vmatpush1.msra.mxu0 %v1242
    %1266 = vmatprep.subr.mxu0 0.0
    %1267 = vmatpush1.msra.mxu0 %v1243
    %1268 = vmatprep.subr.mxu0 0.0
    %1269 = vmatpush1.msra.mxu0 %v1244
    %1270 = vmatprep.subr.mxu0 0.0
    %1271 = vmatpush1.msra.mxu0 %v1245
    %1272 = vmatprep.subr.mxu0 0.0
    %1273 = vmatpush1.msra.mxu0 %v1246
    %1274 = vmatprep.subr.mxu0 0.0
    %1275 = vmatpush1.msra.mxu0 %v1247
    %1276 = vmatprep.subr.mxu0 0.0
    %1277 = vmatpush1.msra.mxu0 %v1248
    %1278 = vmatprep.subr.mxu0 0.0
    %1279 = vmatpush1.msra.mxu0 %v1249
    %1280 = vmatprep.subr.mxu0 0.0
    %1281 = vmatpush1.msra.mxu0 %v1250
    %1282 = vmatprep.subr.mxu0 0.0
    %1283 = vmatpush1.msra.mxu0 %v1251
    %1284 = vmatprep.subr.mxu0 0.0
    %1285 = vmatpush1.msra.mxu0 0.0
    %1286 = vmatprep.subr.mxu0 0.0
    %1287 = vmatpush1.msra.mxu0 0.0
    %1288 = vmatprep.subr.mxu0 0.0
    %1289 = vmatpush1.msra.mxu0 0.0
    %1290 = vmatprep.subr.mxu0 0.0
    %1291 = vmatpush1.msra.mxu0 0.0
    %1292 = vmatprep.subr.mxu0 0.0
    %1293 = vmatpush1.msra.mxu0 0.0
    %1294 = vmatprep.subr.mxu0 0.0
    %1295 = vmatpush1.msra.mxu0 0.0
    %1296 = vmatprep.subr.mxu0 0.0
    %1297 = vmatpush1.msra.mxu0 0.0
    %1298 = vmatprep.subr.mxu0 0.0
    %1299 = vmatpush1.msra.mxu0 0.0
    %1300 = vmatprep.subr.mxu0 0.0
    %1301 = vmatpush1.msra.mxu0 0.0
    %1302 = vmatprep.subr.mxu0 0.0
    %1303 = vmatpush1.msra.mxu0 0.0
    %1304 = vmatprep.subr.mxu0 0.0
    %1305 = vmatpush1.msra.mxu0 0.0
    %1306 = vmatprep.subr.mxu0 0.0
    %1307 = vmatpush1.msra.mxu0 0.0
    %1308 = vmatprep.subr.mxu0 0.0
    %1309 = vmatpush1.msra.mxu0 0.0
    %1310 = vmatprep.subr.mxu0 0.0
    %1311 = vmatpush1.msra.mxu0 0.0
    %1312 = vmatprep.subr.mxu0 0.0
    %1313 = vmatpush1.msra.mxu0 0.0
    %1314 = vmatprep.subr.mxu0 0.0
    %1315 = vmatpush1.msra.mxu0 0.0
    %1316 = vmatprep.mubr.f32.mxu0 0.0
    %1317 = vmatmul.mubr.f32.gmra.mrb[0].mxu0 %v1235
    %v1318 = vpop.f32.mrb[0].mxu0
    %v1319 = vadd.f32 0.0, %v1318
    %v1320 = vpop.f32.mrb[0].mxu0
    %1321 = vdwg.mxu0
    %v1322 = vadd.f32 %v1231, %v1319
    %s1323 = scalar_lea.vmem [#allocation2], 4
    %v1324 = vld [vmem:[%s1323] ss:$8 sm:$0x3]
    %v1325 = vld [vmem:[#allocation10 + $0x180] sm:$0xff]
    %v1326 = vld [vmem:[#allocation10 + $0x188] sm:$0xff]
    %v1327 = vld [vmem:[#allocation10 + $0x190] sm:$0xff]
    %v1328 = vld [vmem:[#allocation10 + $0x198] sm:$0xff]
    %v1329 = vld [vmem:[#allocation10 + $0x1a0] sm:$0xff]
    %v1330 = vld [vmem:[#allocation10 + $0x1a8] sm:$0xff]
    %v1331 = vld [vmem:[#allocation10 + $0x1b0] sm:$0xff]
    %v1332 = vld [vmem:[#allocation10 + $0x1b8] sm:$0xff]
    %v1333 = vld [vmem:[#allocation10 + $0x1c0] sm:$0xff]
    %v1334 = vld [vmem:[#allocation10 + $0x1c8] sm:$0xff]
    %v1335 = vld [vmem:[#allocation10 + $0x1d0] sm:$0xff]
    %v1336 = vld [vmem:[#allocation10 + $0x1d8] sm:$0xff]
    %v1337 = vld [vmem:[#allocation10 + $0x1e0] sm:$0xff]
    %v1338 = vld [vmem:[#allocation10 + $0x1e8] sm:$0xff]
    %v1339 = vld [vmem:[#allocation10 + $0x1f0] sm:$0xff]
    %v1340 = vld [vmem:[#allocation10 + $0x1f8] sm:$0xff]
    %1341 = vmatprep.subr.mxu0 0.0
    %1342 = vmatpush1.msra.mxu0 %v1325
    %1343 = vmatprep.subr.mxu0 0.0
    %1344 = vmatpush1.msra.mxu0 %v1326
    %1345 = vmatprep.subr.mxu0 0.0
    %1346 = vmatpush1.msra.mxu0 %v1327
    %1347 = vmatprep.subr.mxu0 0.0
    %1348 = vmatpush1.msra.mxu0 %v1328
    %1349 = vmatprep.subr.mxu0 0.0
    %1350 = vmatpush1.msra.mxu0 %v1329
    %1351 = vmatprep.subr.mxu0 0.0
    %1352 = vmatpush1.msra.mxu0 %v1330
    %1353 = vmatprep.subr.mxu0 0.0
    %1354 = vmatpush1.msra.mxu0 %v1331
    %1355 = vmatprep.subr.mxu0 0.0
    %1356 = vmatpush1.msra.mxu0 %v1332
    %1357 = vmatprep.subr.mxu0 0.0
    %1358 = vmatpush1.msra.mxu0 %v1333
    %1359 = vmatprep.subr.mxu0 0.0
    %1360 = vmatpush1.msra.mxu0 %v1334
    %1361 = vmatprep.subr.mxu0 0.0
    %1362 = vmatpush1.msra.mxu0 %v1335
    %1363 = vmatprep.subr.mxu0 0.0
    %1364 = vmatpush1.msra.mxu0 %v1336
    %1365 = vmatprep.subr.mxu0 0.0
    %1366 = vmatpush1.msra.mxu0 %v1337
    %1367 = vmatprep.subr.mxu0 0.0
    %1368 = vmatpush1.msra.mxu0 %v1338
    %1369 = vmatprep.subr.mxu0 0.0
    %1370 = vmatpush1.msra.mxu0 %v1339
    %1371 = vmatprep.subr.mxu0 0.0
    %1372 = vmatpush1.msra.mxu0 %v1340
    %1373 = vmatprep.subr.mxu0 0.0
    %1374 = vmatpush1.msra.mxu0 0.0
    %1375 = vmatprep.subr.mxu0 0.0
    %1376 = vmatpush1.msra.mxu0 0.0
    %1377 = vmatprep.subr.mxu0 0.0
    %1378 = vmatpush1.msra.mxu0 0.0
    %1379 = vmatprep.subr.mxu0 0.0
    %1380 = vmatpush1.msra.mxu0 0.0
    %1381 = vmatprep.subr.mxu0 0.0
    %1382 = vmatpush1.msra.mxu0 0.0
    %1383 = vmatprep.subr.mxu0 0.0
    %1384 = vmatpush1.msra.mxu0 0.0
    %1385 = vmatprep.subr.mxu0 0.0
    %1386 = vmatpush1.msra.mxu0 0.0
    %1387 = vmatprep.subr.mxu0 0.0
    %1388 = vmatpush1.msra.mxu0 0.0
    %1389 = vmatprep.subr.mxu0 0.0
    %1390 = vmatpush1.msra.mxu0 0.0
    %1391 = vmatprep.subr.mxu0 0.0
    %1392 = vmatpush1.msra.mxu0 0.0
    %1393 = vmatprep.subr.mxu0 0.0
    %1394 = vmatpush1.msra.mxu0 0.0
    %1395 = vmatprep.subr.mxu0 0.0
    %1396 = vmatpush1.msra.mxu0 0.0
    %1397 = vmatprep.subr.mxu0 0.0
    %1398 = vmatpush1.msra.mxu0 0.0
    %1399 = vmatprep.subr.mxu0 0.0
    %1400 = vmatpush1.msra.mxu0 0.0
    %1401 = vmatprep.subr.mxu0 0.0
    %1402 = vmatpush1.msra.mxu0 0.0
    %1403 = vmatprep.subr.mxu0 0.0
    %1404 = vmatpush1.msra.mxu0 0.0
    %1405 = vmatprep.mubr.f32.mxu0 0.0
    %1406 = vmatmul.mubr.f32.gmra.mrb[0].mxu0 %v1324
    %v1407 = vpop.f32.mrb[0].mxu0
    %v1408 = vadd.f32 0.0, %v1407
    %v1409 = vpop.f32.mrb[0].mxu0
    %1410 = vdwg.mxu0
    %v1411 = vadd.f32 %v1322, %v1408
    %s1412 = scalar_lea.vmem [#allocation2], 5
    %v1413 = vld [vmem:[%s1412] ss:$8 sm:$0x3]
    %v1414 = vld [vmem:[#allocation10 + $0x200] sm:$0xff]
    %v1415 = vld [vmem:[#allocation10 + $0x208] sm:$0xff]
    %v1416 = vld [vmem:[#allocation10 + $0x210] sm:$0xff]
    %v1417 = vld [vmem:[#allocation10 + $0x218] sm:$0xff]
    %v1418 = vld [vmem:[#allocation10 + $0x220] sm:$0xff]
    %v1419 = vld [vmem:[#allocation10 + $0x228] sm:$0xff]
    %v1420 = vld [vmem:[#allocation10 + $0x230] sm:$0xff]
    %v1421 = vld [vmem:[#allocation10 + $0x238] sm:$0xff]
    %v1422 = vld [vmem:[#allocation10 + $0x240] sm:$0xff]
    %v1423 = vld [vmem:[#allocation10 + $0x248] sm:$0xff]
    %v1424 = vld [vmem:[#allocation10 + $0x250] sm:$0xff]
    %v1425 = vld [vmem:[#allocation10 + $0x258] sm:$0xff]
    %v1426 = vld [vmem:[#allocation10 + $0x260] sm:$0xff]
    %v1427 = vld [vmem:[#allocation10 + $0x268] sm:$0xff]
    %v1428 = vld [vmem:[#allocation10 + $0x270] sm:$0xff]
    %v1429 = vld [vmem:[#allocation10 + $0x278] sm:$0xff]
    %1430 = vmatprep.subr.mxu0 0.0
    %1431 = vmatpush1.msra.mxu0 %v1414
    %1432 = vmatprep.subr.mxu0 0.0
    %1433 = vmatpush1.msra.mxu0 %v1415
    %1434 = vmatprep.subr.mxu0 0.0
    %1435 = vmatpush1.msra.mxu0 %v1416
    %1436 = vmatprep.subr.mxu0 0.0
    %1437 = vmatpush1.msra.mxu0 %v1417
    %1438 = vmatprep.subr.mxu0 0.0
    %1439 = vmatpush1.msra.mxu0 %v1418
    %1440 = vmatprep.subr.mxu0 0.0
    %1441 = vmatpush1.msra.mxu0 %v1419
    %1442 = vmatprep.subr.mxu0 0.0
    %1443 = vmatpush1.msra.mxu0 %v1420
    %1444 = vmatprep.subr.mxu0 0.0
    %1445 = vmatpush1.msra.mxu0 %v1421
    %1446 = vmatprep.subr.mxu0 0.0
    %1447 = vmatpush1.msra.mxu0 %v1422
    %1448 = vmatprep.subr.mxu0 0.0
    %1449 = vmatpush1.msra.mxu0 %v1423
    %1450 = vmatprep.subr.mxu0 0.0
    %1451 = vmatpush1.msra.mxu0 %v1424
    %1452 = vmatprep.subr.mxu0 0.0
    %1453 = vmatpush1.msra.mxu0 %v1425
    %1454 = vmatprep.subr.mxu0 0.0
    %1455 = vmatpush1.msra.mxu0 %v1426
    %1456 = vmatprep.subr.mxu0 0.0
    %1457 = vmatpush1.msra.mxu0 %v1427
    %1458 = vmatprep.subr.mxu0 0.0
    %1459 = vmatpush1.msra.mxu0 %v1428
    %1460 = vmatprep.subr.mxu0 0.0
    %1461 = vmatpush1.msra.mxu0 %v1429
    %1462 = vmatprep.subr.mxu0 0.0
    %1463 = vmatpush1.msra.mxu0 0.0
    %1464 = vmatprep.subr.mxu0 0.0
    %1465 = vmatpush1.msra.mxu0 0.0
    %1466 = vmatprep.subr.mxu0 0.0
    %1467 = vmatpush1.msra.mxu0 0.0
    %1468 = vmatprep.subr.mxu0 0.0
    %1469 = vmatpush1.msra.mxu0 0.0
    %1470 = vmatprep.subr.mxu0 0.0
    %1471 = vmatpush1.msra.mxu0 0.0
    %1472 = vmatprep.subr.mxu0 0.0
    %1473 = vmatpush1.msra.mxu0 0.0
    %1474 = vmatprep.subr.mxu0 0.0
    %1475 = vmatpush1.msra.mxu0 0.0
    %1476 = vmatprep.subr.mxu0 0.0
    %1477 = vmatpush1.msra.mxu0 0.0
    %1478 = vmatprep.subr.mxu0 0.0
    %1479 = vmatpush1.msra.mxu0 0.0
    %1480 = vmatprep.subr.mxu0 0.0
    %1481 = vmatpush1.msra.mxu0 0.0
    %1482 = vmatprep.subr.mxu0 0.0
    %1483 = vmatpush1.msra.mxu0 0.0
    %1484 = vmatprep.subr.mxu0 0.0
    %1485 = vmatpush1.msra.mxu0 0.0
    %1486 = vmatprep.subr.mxu0 0.0
    %1487 = vmatpush1.msra.mxu0 0.0
    %1488 = vmatprep.subr.mxu0 0.0
    %1489 = vmatpush1.msra.mxu0 0.0
    %1490 = vmatprep.subr.mxu0 0.0
    %1491 = vmatpush1.msra.mxu0 0.0
    %1492 = vmatprep.subr.mxu0 0.0
    %1493 = vmatpush1.msra.mxu0 0.0
    %1494 = vmatprep.mubr.f32.mxu0 0.0
    %1495 = vmatmul.mubr.f32.gmra.mrb[0].mxu0 %v1413
    %v1496 = vpop.f32.mrb[0].mxu0
    %v1497 = vadd.f32 0.0, %v1496
    %v1498 = vpop.f32.mrb[0].mxu0
    %1499 = vdwg.mxu0
    %v1500 = vadd.f32 %v1411, %v1497
    %v1501 = vld [vmem:[%s12] sm:$0x1]
    %v1503 = vlaneseq
    %v1504 = vshrl.u32 %v1503, 7
    %v1505 = vsub.s32 0, %v1504
    %v1506 = vrot.slane %v1501, %v1505
    %v1508 = vadd.f32 %v1500, %v1506
    %v1509 = vmax.f32 %v1508, 0.0
    %v1510 = vld [vmem:[%s13] sm:$0xff]
    %v1511 = vld [vmem:[%s13 + $0x8] sm:$0xff]
    %v1512 = vld [vmem:[%s13 + $0x10] sm:$0xff]
    %v1513 = vld [vmem:[%s13 + $0x18] sm:$0xff]
    %v1514 = vld [vmem:[%s13 + $0x20] sm:$0xff]
    %v1515 = vld [vmem:[%s13 + $0x28] sm:$0xff]
    %v1516 = vld [vmem:[%s13 + $0x30] sm:$0xff]
    %v1517 = vld [vmem:[%s13 + $0x38] sm:$0xff]
    %v1518 = vld [vmem:[%s13 + $0x40] sm:$0xff]
    %v1519 = vld [vmem:[%s13 + $0x48] sm:$0xff]
    %v1520 = vld [vmem:[%s13 + $0x50] sm:$0xff]
    %v1521 = vld [vmem:[%s13 + $0x58] sm:$0xff]
    %v1522 = vld [vmem:[%s13 + $0x60] sm:$0xff]
    %v1523 = vld [vmem:[%s13 + $0x68] sm:$0xff]
    %v1524 = vld [vmem:[%s13 + $0x70] sm:$0xff]
    %v1525 = vld [vmem:[%s13 + $0x78] sm:$0xff]
    %v1526 = vld [vmem:[%s14] sm:$0x1]
    %v1528 = vlaneseq
    %v1529 = vshrl.u32 %v1528, 7
    %v1530 = vsub.s32 0, %v1529
    %v1531 = vrot.slane %v1526, %v1530
    %1533 = vmatprep.subr.mxu0 0.0
    %1534 = vmatpush1.msra.mxu0 %v1510
    %1535 = vmatprep.subr.mxu0 0.0
    %1536 = vmatpush1.msra.mxu0 %v1511
    %1537 = vmatprep.subr.mxu0 0.0
    %1538 = vmatpush1.msra.mxu0 %v1512
    %1539 = vmatprep.subr.mxu0 0.0
    %1540 = vmatpush1.msra.mxu0 %v1513
    %1541 = vmatprep.subr.mxu0 0.0
    %1542 = vmatpush1.msra.mxu0 %v1514
    %1543 = vmatprep.subr.mxu0 0.0
    %1544 = vmatpush1.msra.mxu0 %v1515
    %1545 = vmatprep.subr.mxu0 0.0
    %1546 = vmatpush1.msra.mxu0 %v1516
    %1547 = vmatprep.subr.mxu0 0.0
    %1548 = vmatpush1.msra.mxu0 %v1517
    %1549 = vmatprep.subr.mxu0 0.0
    %1550 = vmatpush1.msra.mxu0 %v1518
    %1551 = vmatprep.subr.mxu0 0.0
    %1552 = vmatpush1.msra.mxu0 %v1519
    %1553 = vmatprep.subr.mxu0 0.0
    %1554 = vmatpush1.msra.mxu0 %v1520
    %1555 = vmatprep.subr.mxu0 0.0
    %1556 = vmatpush1.msra.mxu0 %v1521
    %1557 = vmatprep.subr.mxu0 0.0
    %1558 = vmatpush1.msra.mxu0 %v1522
    %1559 = vmatprep.subr.mxu0 0.0
    %1560 = vmatpush1.msra.mxu0 %v1523
    %1561 = vmatprep.subr.mxu0 0.0
    %1562 = vmatpush1.msra.mxu0 %v1524
    %1563 = vmatprep.subr.mxu0 0.0
    %1564 = vmatpush1.msra.mxu0 %v1525
    %1565 = vmatprep.subr.mxu0 0.0
    %1566 = vmatpush1.msra.mxu0 0.0
    %1567 = vmatprep.subr.mxu0 0.0
    %1568 = vmatpush1.msra.mxu0 0.0
    %1569 = vmatprep.subr.mxu0 0.0
    %1570 = vmatpush1.msra.mxu0 0.0
    %1571 = vmatprep.subr.mxu0 0.0
    %1572 = vmatpush1.msra.mxu0 0.0
    %1573 = vmatprep.subr.mxu0 0.0
    %1574 = vmatpush1.msra.mxu0 0.0
    %1575 = vmatprep.subr.mxu0 0.0
    %1576 = vmatpush1.msra.mxu0 0.0
    %1577 = vmatprep.subr.mxu0 0.0
    %1578 = vmatpush1.msra.mxu0 0.0
    %1579 = vmatprep.subr.mxu0 0.0
    %1580 = vmatpush1.msra.mxu0 0.0
    %1581 = vmatprep.subr.mxu0 0.0
    %1582 = vmatpush1.msra.mxu0 0.0
    %1583 = vmatprep.subr.mxu0 0.0
    %1584 = vmatpush1.msra.mxu0 0.0
    %1585 = vmatprep.subr.mxu0 0.0
    %1586 = vmatpush1.msra.mxu0 0.0
    %1587 = vmatprep.subr.mxu0 0.0
    %1588 = vmatpush1.msra.mxu0 0.0
    %1589 = vmatprep.subr.mxu0 0.0
    %1590 = vmatpush1.msra.mxu0 0.0
    %1591 = vmatprep.subr.mxu0 0.0
    %1592 = vmatpush1.msra.mxu0 0.0
    %1593 = vmatprep.subr.mxu0 0.0
    %1594 = vmatpush1.msra.mxu0 0.0
    %1595 = vmatprep.subr.mxu0 0.0
    %1596 = vmatpush1.msra.mxu0 0.0
    %1597 = vmatprep.mubr.f32.mxu0 0.0
    %1598 = vmatmul.mubr.f32.gmra.mrb[0].mxu0 %v1509
    %v1599 = vpop.f32.mrb[0].mxu0
    %v1600 = vadd.f32 %v1531, %v1599
    %v1601 = vpop.f32.mrb[0].mxu0
    %1602 = vdwg.mxu0
    %vm1603 = vcmask 1041408
    %v1604 = vsel %vm1603, %v1600, -inf
    %1605 = vmax.xlane.f32.xlu0 %v1604
    %v1606 = vpop.xlane.xlu0 %1605
    %v1607 = vsub.f32 %v1600, %v1606
    %v1608 = vmul.f32 %v1607, 1.442695
    %v1609 = vpow.pop %v1608
    %v1610 = vsel %vm1603, %v1609, 0.0
    %1611 = vadd.xlane.f32.xlu0 %v1610
    %v1612 = vpop.xlane.xlu0 %1611
    %v1613 = vrcp.pop %v1612
    %v1614 = vmul.f32 %v1609, %v1613
    %1615 = vst [vmem:[#allocation12] sm:$0x3] %v1614
    // Predicated region
    $region78: #{tpu_custom_call.1} parent=1 // pred_check
      _
    $region79: #{tpu_custom_call.1} parent=1 // pred_check_branch
      %1617 = sbr.rel (0) target = $region81
    $region80: #{tpu_custom_call.1} parent=1 // pred_region
      %s1619 = ssub.s32 32, 32
      %1620 = vsyncadd [#allocation6], %s1619
      %s1622 = sshll.u32 [#allocation12], 4
      %s1623 = int_to_ptr.vmem [resolvable:$true] %s1622
      %1625 = dma.vmem_to_hbm [thread:$0]  %s1623, 32, %s15, [#allocation6]
    $region81: #{tpu_custom_call.1} parent=1 // pred_fallthru
      _
    // Predicated region
    $region82: #{tpu_custom_call.1} parent=1 // pred_check
      _
    $region83: #{tpu_custom_call.1} parent=1 // pred_check_branch
      %1627 = sbr.rel (0) target = $region85
    $region84: #{tpu_custom_call.1} parent=1 // pred_region
      %1628 = dma.done [#allocation6], 32
    $region85: #{tpu_custom_call.1} parent=1 // pred_fallthru
      _
    %1629 = vsyncpa [#allocation5], 1
    %1630 = vsyncpa [#allocation8], 1
    %1631 = vsyncpa [#allocation11], 1
    %1632 = vsyncpa [#allocation6], 1

</llo_original>
